<compile_context>
chip_gen: v6e
topology: v6e:2x2x1
jax: 0.10.0
libtpu: 0.0.40
codegen_flags: <defaults>
</compile_context>

<pallas_src>
import math
import functools

import jax
import jax.numpy as jnp
from jax.experimental import pallas as pl
from jax.experimental.pallas import tpu as pltpu


# ----------------------------------------------------------------------------
# helpers
# ----------------------------------------------------------------------------

def _round_up(x, m):
    return (x + m - 1) // m * m


def _pick_tile(dim, target):
    """Full-array block when small, otherwise an aligned tile."""
    return dim if dim <= target else target


def _seq_tiles(seq_len, max_tq=128):
    """Pad the token count to a multiple of 16 and pick a q-tile size that
    divides the padded length exactly (no ragged / mostly-padding q tiles)."""
    s16 = _round_up(seq_len, 16)
    nq = max(1, -(-s16 // max_tq))
    tq = _round_up(-(-s16 // nq), 16)
    return nq * tq, tq


# ----------------------------------------------------------------------------
# Fused matmul kernel:  [LayerNorm ->] bf16 matmul (+bias) [+QuickGELU] [+res]
# ----------------------------------------------------------------------------

def _make_matmul_kernel(has_ln, has_bias, has_res, activation):
    def kernel(*refs):
        it = iter(refs)
        x_ref = next(it)
        w_ref = next(it)
        g_ref = next(it) if has_ln else None
        bln_ref = next(it) if has_ln else None
        bias_ref = next(it) if has_bias else None
        res_ref = next(it) if has_res else None
        o_ref = next(it)

        x = x_ref[...].astype(jnp.float32)
        if has_ln:
            mean = jnp.mean(x, axis=-1, keepdims=True)
            var = jnp.mean(jnp.square(x - mean), axis=-1, keepdims=True)
            x = (x - mean) * jax.lax.rsqrt(var + 1e-5)
            x = x * g_ref[...] + bln_ref[...]

        # bf16 operands on the MXU, f32 accumulation.
        y = jnp.dot(x.astype(jnp.bfloat16), w_ref[...],
                    preferred_element_type=jnp.float32)
        if has_bias:
            y = y + bias_ref[...]
        if activation == "quick_gelu":
            y = y * jax.nn.sigmoid(1.702 * y)          # CLIP QuickGELU (f32)
        if has_res:
            y = y + res_ref[...].astype(jnp.float32)
        o_ref[...] = y.astype(o_ref.dtype)
    return kernel


def fused_matmul(x, w, bias=None, *, ln_g=None, ln_b=None, residual=None,
                 activation=None, out_dtype=jnp.bfloat16, tm=256, tn=256):
    """y = act( LN(x) @ w + bias ) + residual, tiled over (M, N).

    x:(M,K)  w:(K,N) (already transposed to (in,out) and bf16)  bias:(N,)
    K is kept as one full block so LN can be fused (K <= 4*width for CLIP).
    """
    M, K = x.shape
    K2, N = w.shape
    assert K == K2
    tm = _pick_tile(M, tm)
    tn = _pick_tile(N, tn)
    grid = (pl.cdiv(M, tm), pl.cdiv(N, tn))

    has_ln = ln_g is not None
    has_bias = bias is not None
    has_res = residual is not None

    in_specs = [
        pl.BlockSpec((tm, K), lambda i, j: (i, 0)),
        pl.BlockSpec((K, tn), lambda i, j: (0, j)),
    ]
    args = [x.astype(jnp.bfloat16), w.astype(jnp.bfloat16)]
    if has_ln:
        in_specs += [pl.BlockSpec((1, K), lambda i, j: (0, 0)),
                     pl.BlockSpec((1, K), lambda i, j: (0, 0))]
        args += [ln_g.reshape(1, K).astype(jnp.float32),
                 ln_b.reshape(1, K).astype(jnp.float32)]
    if has_bias:
        in_specs.append(pl.BlockSpec((1, tn), lambda i, j: (0, j)))
        args.append(bias.reshape(1, N).astype(jnp.float32))
    if has_res:
        in_specs.append(pl.BlockSpec((tm, tn), lambda i, j: (i, j)))
        args.append(residual.astype(jnp.bfloat16))

    kernel = _make_matmul_kernel(has_ln, has_bias, has_res, activation)

    return pl.pallas_call(
        kernel,
        out_shape=jax.ShapeDtypeStruct((M, N), out_dtype),
        grid=grid,
        in_specs=in_specs,
        out_specs=pl.BlockSpec((tm, tn), lambda i, j: (i, j)),
        compiler_params=pltpu.CompilerParams(
            dimension_semantics=("parallel", "parallel")),
    )(*args)


# ----------------------------------------------------------------------------
# ln_pre with the positional-embedding (+class-embedding) add fused in
# ----------------------------------------------------------------------------

def _ln_pos_kernel(x_ref, pos_ref, g_ref, b_ref, o_ref):
    x = x_ref[...].astype(jnp.float32) + pos_ref[...]
    mean = jnp.mean(x, axis=-1, keepdims=True)
    var = jnp.mean(jnp.square(x - mean), axis=-1, keepdims=True)
    xn = (x - mean) * jax.lax.rsqrt(var + 1e-5)
    o_ref[...] = (xn * g_ref[...] + b_ref[...]).astype(o_ref.dtype)


def ln_pre_pos(x, pos, g, b, *, out_dtype=jnp.bfloat16):
    """x: (B, S_pad, D) tokens (row 0 zero, cls folded into pos).
    pos: (S_pad, D) positional table (row 0 already includes class emb)."""
    B, S_pad, D = x.shape
    return pl.pallas_call(
        _ln_pos_kernel,
        out_shape=jax.ShapeDtypeStruct((B, S_pad, D), out_dtype),
        grid=(B,),
        in_specs=[pl.BlockSpec((None, S_pad, D), lambda bi: (bi, 0, 0)),
                  pl.BlockSpec((S_pad, D), lambda bi: (0, 0)),
                  pl.BlockSpec((1, D), lambda bi: (0, 0)),
                  pl.BlockSpec((1, D), lambda bi: (0, 0))],
        out_specs=pl.BlockSpec((None, S_pad, D), lambda bi: (bi, 0, 0)),
        compiler_params=pltpu.CompilerParams(
            dimension_semantics=("parallel",)),
    )(x, pos.astype(jnp.float32),
      g.reshape(1, D).astype(jnp.float32),
      b.reshape(1, D).astype(jnp.float32))


# ----------------------------------------------------------------------------
# Attention: reads the (B, S_pad, 3D) qkv slab directly (no head transposes),
# single KV block (full padded sequence), single-pass softmax, all heads
# handled inside the kernel so the output store is lane-dense (width D).
# ----------------------------------------------------------------------------

def _make_attention_kernel(heads, dh, d_model, scale, seq_len, s_pad, tq):
    def kernel(qkv_ref, o_ref):
        # qkv_ref: (S_pad, 3*D) bf16 for one batch element; o_ref: (tq, D)
        row0 = pl.multiple_of(pl.program_id(1) * tq, 16)

        if seq_len < s_pad:  # static: mask padded key columns
            col = jax.lax.broadcasted_iota(jnp.int32, (tq, s_pad), 1)
            key_valid = col < seq_len
        else:
            key_valid = None

        outs = []
        for h in range(heads):
            q = qkv_ref[pl.ds(row0, tq), pl.ds(h * dh, dh)]
            k = qkv_ref[:, pl.ds(d_model + h * dh, dh)]
            v = qkv_ref[:, pl.ds(2 * d_model + h * dh, dh)]

            # pre-scale q (cheaper than scaling the (tq, S_pad) scores)
            qs = (q.astype(jnp.float32) * scale).astype(jnp.bfloat16)
            # contract last dims directly -> no k.T relayout through the XLU
            s = jax.lax.dot_general(qs, k, (((1,), (1,)), ((), ())),
                                    preferred_element_type=jnp.float32)
            if key_valid is not None:
                s = jnp.where(key_valid, s, -1e30)

            m = jnp.max(s, axis=-1, keepdims=True)
            p = jnp.exp(s - m)
            denom = jnp.sum(p, axis=-1, keepdims=True)
            p = p * pl.reciprocal(denom, approx=True)
            o = jnp.dot(p.astype(jnp.bfloat16), v,
                        preferred_element_type=jnp.float32)          # (tq, dh)
            outs.append(o)

        # single lane-dense (tq, D) store
        o_ref[...] = jnp.concatenate(outs, axis=-1).astype(o_ref.dtype)
    return kernel


def attention(qkv3, *, heads, seq_len, tq):
    """qkv3: (B, S_pad, 3*D) bf16 with layout [q | k | v], heads packed
    (H, dh) inside each D.  Returns (B, S_pad, D) bf16."""
    B, S_pad, threeD = qkv3.shape
    D = threeD // 3
    dh = D // heads
    assert heads * dh == D and S_pad % tq == 0
    nq = S_pad // tq
    scale = 1.0 / math.sqrt(dh)
    kernel = _make_attention_kernel(heads, dh, D, scale, seq_len, S_pad, tq)

    return pl.pallas_call(
        kernel,
        out_shape=jax.ShapeDtypeStruct((B, S_pad, D), jnp.bfloat16),
        grid=(B, nq),
        in_specs=[pl.BlockSpec((None, S_pad, threeD), lambda b, qi: (b, 0, 0))],
        out_specs=pl.BlockSpec((None, tq, D), lambda b, qi: (b, qi, 0)),
        compiler_params=pltpu.CompilerParams(
            dimension_semantics=("parallel", "arbitrary")),
    )(qkv3)


# ----------------------------------------------------------------------------
# Model: CLIP VisualTransformer (what model.encode_image runs)
# ----------------------------------------------------------------------------

def init_params(key, *, image_size, patch_size, channels, width, layers,
                heads, embed_dim):
    """Weights are stored pre-transposed to (in, out) and pre-cast to bf16,
    which is what a one-time checkpoint conversion would do."""
    grid = image_size // patch_size
    num_tokens = grid * grid + 1
    scale = width ** -0.5
    keys = jax.random.split(key, 4 + 8 * layers)
    ki = iter(range(len(keys)))

    def nrm(shape, s=0.02):
        return s * jax.random.normal(keys[next(ki)], shape, dtype=jnp.float32)

    params = {
        # conv1 kernel flattened + transposed once: (C*P*P, width), bf16
        "conv1_w": nrm((channels * patch_size * patch_size, width)
                       ).astype(jnp.bfloat16),
        "class_embedding": scale * jax.random.normal(
            keys[next(ki)], (width,), dtype=jnp.float32),
        "positional_embedding": scale * jax.random.normal(
            keys[next(ki)], (num_tokens, width), dtype=jnp.float32),
        "proj": (scale * jax.random.normal(
            keys[next(ki)], (width, embed_dim), dtype=jnp.float32)
                 ).astype(jnp.bfloat16),
        "ln_pre_g": jnp.ones((width,), jnp.float32),
        "ln_pre_b": jnp.zeros((width,), jnp.float32),
        "ln_post_g": jnp.ones((width,), jnp.float32),
        "ln_post_b": jnp.zeros((width,), jnp.float32),
        "blocks": [],
    }
    for _ in range(layers):
        blk = {
            "ln_1_g": jnp.ones((width,), jnp.float32),
            "ln_1_b": jnp.zeros((width,), jnp.float32),
            "w_qkv": nrm((width, 3 * width)).astype(jnp.bfloat16),
            "b_qkv": nrm((3 * width,)),
            "w_out": nrm((width, width)).astype(jnp.bfloat16),
            "b_out": nrm((width,)),
            "ln_2_g": jnp.ones((width,), jnp.float32),
            "ln_2_b": jnp.zeros((width,), jnp.float32),
            "w_fc": nrm((width, 4 * width)).astype(jnp.bfloat16),
            "b_fc": nrm((4 * width,)),
            "w_proj": nrm((4 * width, width)).astype(jnp.bfloat16),
            "b_proj": nrm((width,)),
        }
        params["blocks"].append(blk)
    return params


def residual_attention_block(x2d, p, *, batch, seq_pad, seq_len, heads, tq):
    M, D = x2d.shape

    # --- attention branch (ln_1 fused into the qkv matmul prologue) ---
    qkv = fused_matmul(x2d, p["w_qkv"], p["b_qkv"],
                       ln_g=p["ln_1_g"], ln_b=p["ln_1_b"])          # (M, 3D)
    # free reshapes only -- no head split / transpose in XLA
    a = attention(qkv.reshape(batch, seq_pad, 3 * D),
                  heads=heads, seq_len=seq_len, tq=tq)              # (B,S,D)
    a = a.reshape(M, D)

    # out-proj with bias + residual-add fused in the epilogue
    x2d = fused_matmul(a, p["w_out"], p["b_out"], residual=x2d)      # (M, D)

    # --- MLP branch (ln_2 fused in prologue, QuickGELU + residual fused) ---
    h = fused_matmul(x2d, p["w_fc"], p["b_fc"],
                     ln_g=p["ln_2_g"], ln_b=p["ln_2_b"],
                     activation="quick_gelu")                         # (M, 4D)
    x2d = fused_matmul(h, p["w_proj"], p["b_proj"], residual=x2d)     # (M, D)
    return x2d


def image_clip_forward(params, image, *, patch_size, heads):
    """Equivalent of ImageCLIP.forward(image) == model.encode_image(image)."""
    B, C, H, W = image.shape
    P = patch_size
    gh, gw = H // P, W // P
    width = params["conv1_w"].shape[1]
    S = gh * gw + 1                                  # patches + class token
    S_pad, tq = _seq_tiles(S)

    # conv1 (stride=patch, no bias) as patch extraction + MXU matmul.
    # TODO(synk): patch extraction stays as an XLA relayout of the raw image.
    patches = (image.reshape(B, C, gh, P, gw, P)
                    .transpose(0, 2, 4, 1, 3, 5)
                    .reshape(B * gh * gw, C * P * P))
    x = fused_matmul(patches, params["conv1_w"])                # (B*gh*gw, D)

    # token slab: row 0 reserved for the class token, rows >= S are padding
    x = x.reshape(B, gh * gw, width)
    x = jnp.pad(x, ((0, 0), (1, S_pad - 1 - gh * gw), (0, 0)))   # (B,S_pad,D)

    # positional table with the class embedding folded into row 0, padded
    pos = params["positional_embedding"].at[0].add(params["class_embedding"])
    pos = jnp.pad(pos, ((0, S_pad - S), (0, 0)))                 # (S_pad, D)

    # ln_pre with the pos/cls add fused in; its output IS the residual stream
    x2d = ln_pre_pos(x, pos, params["ln_pre_g"], params["ln_pre_b"]
                     ).reshape(B * S_pad, width)

    # transformer
    for blk in params["blocks"]:
        x2d = residual_attention_block(x2d, blk, batch=B, seq_pad=S_pad,
                                       seq_len=S, heads=heads, tq=tq)

    # ln_post on the class token fused into the final projection (no bias)
    cls_tok = x2d.reshape(B, S_pad, width)[:, 0, :]
    out = fused_matmul(cls_tok, params["proj"],
                       ln_g=params["ln_post_g"], ln_b=params["ln_post_b"],
                       out_dtype=jnp.float32)
    return out                                                     # (B, embed)


# ----------------------------------------------------------------------------
# Main
# ----------------------------------------------------------------------------

if __name__ == "__main__":
    B, C, HW = 2, 3, 16          # small synthetic shapes
    PATCH = 8
    WIDTH = 32
    LAYERS = 2
    HEADS = 2
    EMBED_DIM = 16

    key = jax.random.PRNGKey(0)
    pkey, xkey = jax.random.split(key)

    params = init_params(pkey, image_size=HW, patch_size=PATCH, channels=C,
                         width=WIDTH, layers=LAYERS, heads=HEADS,
                         embed_dim=EMBED_DIM)
    image = jax.random.normal(xkey, (B, C, HW, HW), dtype=jnp.float32)

    fwd = jax.jit(functools.partial(image_clip_forward,
                                    patch_size=PATCH, heads=HEADS))
    out = fwd(params, image)
    jax.block_until_ready(out)

    assert out.shape == (B, EMBED_DIM), out.shape
    assert jnp.all(jnp.isfinite(out))
    print("KERNEL_OK")
</pallas_src>

<mosaic_0001>
module attributes {stable_mosaic.version = 11 : i64} {
  func.func @kernel(%arg0: i32, %arg1: i32, %arg2: memref<8x192xbf16, #tpu.memory_space<vmem>>, %arg3: memref<192x32xbf16, #tpu.memory_space<vmem>>, %arg4: memref<8x32xbf16, #tpu.memory_space<vmem>>) attributes {dimension_semantics = [#tpu.dimension_semantics<parallel>, #tpu.dimension_semantics<parallel>], iteration_bounds = array<i64: 1, 1>, scalar_prefetch = 0 : i64, scratch_operands = 0 : i64, tpu.core_type = #tpu.core_type<tc>, window_params = [{transform_indices = @transform_0, window_bounds = array<i64: 8, 192>}, {transform_indices = @transform_1, window_bounds = array<i64: 192, 32>}, {transform_indices = @transform_2, window_bounds = array<i64: 8, 32>}]} {
    %c0 = arith.constant 0 : index
    %c0_0 = arith.constant 0 : index
    %0 = vector.load %arg2[%c0, %c0_0] : memref<8x192xbf16, #tpu.memory_space<vmem>>, vector<8x192xbf16>
    %1 = arith.extf %0 : vector<8x192xbf16> to vector<8x192xf32>
    %2 = arith.truncf %1 : vector<8x192xf32> to vector<8x192xbf16>
    %c0_1 = arith.constant 0 : index
    %c0_2 = arith.constant 0 : index
    %3 = vector.load %arg3[%c0_1, %c0_2] : memref<192x32xbf16, #tpu.memory_space<vmem>>, vector<192x32xbf16>
    %cst = arith.constant dense<0.000000e+00> : vector<8x32xf32>
    %4 = tpu.matmul %2, %3, %cst {dimension_numbers = #tpu.dot_dimension_numbers<[1], [0], [0], [1], [0, 0, 1, 1], [], []>} : vector<8x192xbf16>, vector<192x32xbf16>, vector<8x32xf32> -> vector<8x32xf32>
    %5 = arith.truncf %4 : vector<8x32xf32> to vector<8x32xbf16>
    %c0_3 = arith.constant 0 : index
    %c0_4 = arith.constant 0 : index
    %6 = vector.load %arg4[%c0_3, %c0_4] : memref<8x32xbf16, #tpu.memory_space<vmem>>, vector<8x32xbf16>
    tpu.vector_store %arg4[%c0_3, %c0_4], %5 {strides = array<i32>} : memref<8x32xbf16, #tpu.memory_space<vmem>>, vector<8x32xbf16>,
    return
  }
  func.func @transform_0(%arg0: i32, %arg1: i32) -> (i32, i32) {
    %c0_i32 = arith.constant 0 : i32
    %c0_i32_0 = arith.constant 0 : i32
    return %arg0, %c0_i32 : i32, i32
  }
  func.func @transform_1(%arg0: i32, %arg1: i32) -> (i32, i32) {
    %c0_i32 = arith.constant 0 : i32
    %c0_i32_0 = arith.constant 0 : i32
    return %c0_i32, %arg1 : i32, i32
  }
  func.func @transform_2(%arg0: i32, %arg1: i32) -> (i32, i32) {
    %c0_i32 = arith.constant 0 : i32
    return %arg0, %arg1 : i32, i32
  }
}

module attributes {stable_mosaic.version = 11 : i64} {
  func.func @kernel(%arg0: i32, %arg1: i32, %arg2: memref<32x32xbf16, #tpu.memory_space<vmem>>, %arg3: memref<32x96xbf16, #tpu.memory_space<vmem>>, %arg4: memref<1x32xf32, #tpu.memory_space<vmem>>, %arg5: memref<1x32xf32, #tpu.memory_space<vmem>>, %arg6: memref<1x96xf32, #tpu.memory_space<vmem>>, %arg7: memref<32x96xbf16, #tpu.memory_space<vmem>>) attributes {dimension_semantics = [#tpu.dimension_semantics<parallel>, #tpu.dimension_semantics<parallel>], iteration_bounds = array<i64: 1, 1>, scalar_prefetch = 0 : i64, scratch_operands = 0 : i64, tpu.core_type = #tpu.core_type<tc>, window_params = [{transform_indices = @transform_0, window_bounds = array<i64: 32, 32>}, {transform_indices = @transform_1, window_bounds = array<i64: 32, 96>}, {pipeline_mode = #tpu.pipeline_mode<synchronous>, transform_indices = @transform_2, window_bounds = array<i64: 1, 32>}, {pipeline_mode = #tpu.pipeline_mode<synchronous>, transform_indices = @transform_3, window_bounds = array<i64: 1, 32>}, {transform_indices = @transform_4, window_bounds = array<i64: 1, 96>}, {transform_indices = @transform_5, window_bounds = array<i64: 32, 96>}]} {
    %c0 = arith.constant 0 : index
    %c0_0 = arith.constant 0 : index
    %0 = vector.load %arg2[%c0, %c0_0] : memref<32x32xbf16, #tpu.memory_space<vmem>>, vector<32x32xbf16>
    %1 = arith.extf %0 : vector<32x32xbf16> to vector<32x32xf32>
    %cst = arith.constant dense<0.000000e+00> : vector<32xf32>
    %2 = vector.multi_reduction <add>, %1, %cst [1] : vector<32x32xf32> to vector<32xf32>
    %3 = vector.shape_cast %2 : vector<32xf32> to vector<32x1xf32>
    %cst_1 = arith.constant 3.200000e+01 : f32
    %4 = vector.broadcast %cst_1 : f32 to vector<32x1xf32>
    %5 = arith.divf %3, %4 : vector<32x1xf32>
    %6 = vector.broadcast %5 : vector<32x1xf32> to vector<32x32xf32>
    %7 = arith.subf %1, %6 : vector<32x32xf32>
    %8 = arith.mulf %7, %7 : vector<32x32xf32>
    %cst_2 = arith.constant dense<0.000000e+00> : vector<32xf32>
    %9 = vector.multi_reduction <add>, %8, %cst_2 [1] : vector<32x32xf32> to vector<32xf32>
    %10 = vector.shape_cast %9 : vector<32xf32> to vector<32x1xf32>
    %cst_3 = arith.constant 3.200000e+01 : f32
    %11 = vector.broadcast %cst_3 : f32 to vector<32x1xf32>
    %12 = arith.divf %10, %11 : vector<32x1xf32>
    %13 = vector.broadcast %5 : vector<32x1xf32> to vector<32x32xf32>
    %14 = arith.subf %1, %13 : vector<32x32xf32>
    %cst_4 = arith.constant 9.99999974E-6 : f32
    %15 = vector.broadcast %cst_4 : f32 to vector<32x1xf32>
    %16 = arith.addf %12, %15 : vector<32x1xf32>
    %17 = math.rsqrt %16 : vector<32x1xf32>
    %18 = vector.broadcast %17 : vector<32x1xf32> to vector<32x32xf32>
    %19 = arith.mulf %14, %18 : vector<32x32xf32>
    %c0_5 = arith.constant 0 : index
    %c0_6 = arith.constant 0 : index
    %20 = vector.load %arg4[%c0_5, %c0_6] : memref<1x32xf32, #tpu.memory_space<vmem>>, vector<1x32xf32>
    %21 = vector.broadcast %20 : vector<1x32xf32> to vector<32x32xf32>
    %22 = arith.mulf %19, %21 : vector<32x32xf32>
    %c0_7 = arith.constant 0 : index
    %c0_8 = arith.constant 0 : index
    %23 = vector.load %arg5[%c0_7, %c0_8] : memref<1x32xf32, #tpu.memory_space<vmem>>, vector<1x32xf32>
    %24 = vector.broadcast %23 : vector<1x32xf32> to vector<32x32xf32>
    %25 = arith.addf %22, %24 : vector<32x32xf32>
    %26 = arith.truncf %25 : vector<32x32xf32> to vector<32x32xbf16>
    %c0_9 = arith.constant 0 : index
    %c0_10 = arith.constant 0 : index
    %27 = vector.load %arg3[%c0_9, %c0_10] : memref<32x96xbf16, #tpu.memory_space<vmem>>, vector<32x96xbf16>
    %cst_11 = arith.constant dense<0.000000e+00> : vector<32x96xf32>
    %28 = tpu.matmul %26, %27, %cst_11 {dimension_numbers = #tpu.dot_dimension_numbers<[1], [0], [0], [1], [0, 0, 1, 1], [], []>} : vector<32x32xbf16>, vector<32x96xbf16>, vector<32x96xf32> -> vector<32x96xf32>
    %c0_12 = arith.constant 0 : index
    %c0_13 = arith.constant 0 : index
    %29 = vector.load %arg6[%c0_12, %c0_13] : memref<1x96xf32, #tpu.memory_space<vmem>>, vector<1x96xf32>
    %30 = vector.broadcast %29 : vector<1x96xf32> to vector<32x96xf32>
    %31 = arith.addf %28, %30 : vector<32x96xf32>
    %32 = arith.truncf %31 : vector<32x96xf32> to vector<32x96xbf16>
    %c0_14 = arith.constant 0 : index
    %c0_15 = arith.constant 0 : index
    %33 = vector.load %arg7[%c0_14, %c0_15] : memref<32x96xbf16, #tpu.memory_space<vmem>>, vector<32x96xbf16>
    tpu.vector_store %arg7[%c0_14, %c0_15], %32 {strides = array<i32>} : memref<32x96xbf16, #tpu.memory_space<vmem>>, vector<32x96xbf16>,
    return
  }
  func.func @transform_0(%arg0: i32, %arg1: i32) -> (i32, i32) {
    %c0_i32 = arith.constant 0 : i32
    %c0_i32_0 = arith.constant 0 : i32
    return %arg0, %c0_i32 : i32, i32
  }
  func.func @transform_1(%arg0: i32, %arg1: i32) -> (i32, i32) {
    %c0_i32 = arith.constant 0 : i32
    %c0_i32_0 = arith.constant 0 : i32
    return %c0_i32, %arg1 : i32, i32
  }
  func.func @transform_2(%arg0: i32, %arg1: i32) -> (i32, i32) {
    %c0_i32 = arith.constant 0 : i32
    %c0_i32_0 = arith.constant 0 : i32
    %c0_i32_1 = arith.constant 0 : i32
    return %c0_i32, %c0_i32_0 : i32, i32
  }
  func.func @transform_3(%arg0: i32, %arg1: i32) -> (i32, i32) {
    %c0_i32 = arith.constant 0 : i32
    %c0_i32_0 = arith.constant 0 : i32
    %c0_i32_1 = arith.constant 0 : i32
    return %c0_i32, %c0_i32_0 : i32, i32
  }
  func.func @transform_4(%arg0: i32, %arg1: i32) -> (i32, i32) {
    %c0_i32 = arith.constant 0 : i32
    %c0_i32_0 = arith.constant 0 : i32
    return %c0_i32, %arg1 : i32, i32
  }
  func.func @transform_5(%arg0: i32, %arg1: i32) -> (i32, i32) {
    %c0_i32 = arith.constant 0 : i32
    return %arg0, %arg1 : i32, i32
  }
}

module attributes {stable_mosaic.version = 11 : i64} {
  func.func @_ln_pos_kernel(%arg0: i32, %arg1: memref<1x16x32xbf16, #tpu.memory_space<vmem>>, %arg2: memref<16x32xf32, #tpu.memory_space<vmem>>, %arg3: memref<1x32xf32, #tpu.memory_space<vmem>>, %arg4: memref<1x32xf32, #tpu.memory_space<vmem>>, %arg5: memref<1x16x32xbf16, #tpu.memory_space<vmem>>) attributes {dimension_semantics = [#tpu.dimension_semantics<parallel>], iteration_bounds = array<i64: 2>, scalar_prefetch = 0 : i64, scratch_operands = 0 : i64, tpu.core_type = #tpu.core_type<tc>, window_params = [{transform_indices = @transform_0, window_bounds = array<i64: 1, 16, 32>}, {pipeline_mode = #tpu.pipeline_mode<synchronous>, transform_indices = @transform_1, window_bounds = array<i64: 16, 32>}, {pipeline_mode = #tpu.pipeline_mode<synchronous>, transform_indices = @transform_2, window_bounds = array<i64: 1, 32>}, {pipeline_mode = #tpu.pipeline_mode<synchronous>, transform_indices = @transform_3, window_bounds = array<i64: 1, 32>}, {transform_indices = @transform_4, window_bounds = array<i64: 1, 16, 32>}]} {
    %c0 = arith.constant 0 : index
    %c0_0 = arith.constant 0 : index
    %c0_1 = arith.constant 0 : index
    %0 = vector.load %arg1[%c0, %c0_0, %c0_1] : memref<1x16x32xbf16, #tpu.memory_space<vmem>>, vector<1x16x32xbf16>
    %1 = vector.shape_cast %0 : vector<1x16x32xbf16> to vector<16x32xbf16>
    %2 = arith.extf %1 : vector<16x32xbf16> to vector<16x32xf32>
    %c0_2 = arith.constant 0 : index
    %c0_3 = arith.constant 0 : index
    %3 = vector.load %arg2[%c0_2, %c0_3] : memref<16x32xf32, #tpu.memory_space<vmem>>, vector<16x32xf32>
    %4 = arith.addf %2, %3 : vector<16x32xf32>
    %cst = arith.constant dense<0.000000e+00> : vector<16xf32>
    %5 = vector.multi_reduction <add>, %4, %cst [1] : vector<16x32xf32> to vector<16xf32>
    %6 = vector.shape_cast %5 : vector<16xf32> to vector<16x1xf32>
    %cst_4 = arith.constant 3.200000e+01 : f32
    %7 = vector.broadcast %cst_4 : f32 to vector<16x1xf32>
    %8 = arith.divf %6, %7 : vector<16x1xf32>
    %9 = vector.broadcast %8 : vector<16x1xf32> to vector<16x32xf32>
    %10 = arith.subf %4, %9 : vector<16x32xf32>
    %11 = arith.mulf %10, %10 : vector<16x32xf32>
    %cst_5 = arith.constant dense<0.000000e+00> : vector<16xf32>
    %12 = vector.multi_reduction <add>, %11, %cst_5 [1] : vector<16x32xf32> to vector<16xf32>
    %13 = vector.shape_cast %12 : vector<16xf32> to vector<16x1xf32>
    %cst_6 = arith.constant 3.200000e+01 : f32
    %14 = vector.broadcast %cst_6 : f32 to vector<16x1xf32>
    %15 = arith.divf %13, %14 : vector<16x1xf32>
    %16 = vector.broadcast %8 : vector<16x1xf32> to vector<16x32xf32>
    %17 = arith.subf %4, %16 : vector<16x32xf32>
    %cst_7 = arith.constant 9.99999974E-6 : f32
    %18 = vector.broadcast %cst_7 : f32 to vector<16x1xf32>
    %19 = arith.addf %15, %18 : vector<16x1xf32>
    %20 = math.rsqrt %19 : vector<16x1xf32>
    %21 = vector.broadcast %20 : vector<16x1xf32> to vector<16x32xf32>
    %22 = arith.mulf %17, %21 : vector<16x32xf32>
    %c0_8 = arith.constant 0 : index
    %c0_9 = arith.constant 0 : index
    %23 = vector.load %arg3[%c0_8, %c0_9] : memref<1x32xf32, #tpu.memory_space<vmem>>, vector<1x32xf32>
    %24 = vector.broadcast %23 : vector<1x32xf32> to vector<16x32xf32>
    %25 = arith.mulf %22, %24 : vector<16x32xf32>
    %c0_10 = arith.constant 0 : index
    %c0_11 = arith.constant 0 : index
    %26 = vector.load %arg4[%c0_10, %c0_11] : memref<1x32xf32, #tpu.memory_space<vmem>>, vector<1x32xf32>
    %27 = vector.broadcast %26 : vector<1x32xf32> to vector<16x32xf32>
    %28 = arith.addf %25, %27 : vector<16x32xf32>
    %29 = arith.truncf %28 : vector<16x32xf32> to vector<16x32xbf16>
    %c0_12 = arith.constant 0 : index
    %c0_13 = arith.constant 0 : index
    %c0_14 = arith.constant 0 : index
    %30 = vector.load %arg5[%c0_12, %c0_13, %c0_14] : memref<1x16x32xbf16, #tpu.memory_space<vmem>>, vector<1x16x32xbf16>
    %31 = vector.shape_cast %30 : vector<1x16x32xbf16> to vector<16x32xbf16>
    %32 = vector.shape_cast %29 : vector<16x32xbf16> to vector<1x16x32xbf16>
    tpu.vector_store %arg5[%c0_12, %c0_13, %c0_14], %32 {strides = array<i32>} : memref<1x16x32xbf16, #tpu.memory_space<vmem>>, vector<1x16x32xbf16>,
    return
  }
  func.func @transform_0(%arg0: i32) -> (i32, i32, i32) {
    %c0_i32 = arith.constant 0 : i32
    %c0_i32_0 = arith.constant 0 : i32
    %c0_i32_1 = arith.constant 0 : i32
    return %arg0, %c0_i32, %c0_i32_0 : i32, i32, i32
  }
  func.func @transform_1(%arg0: i32) -> (i32, i32) {
    %c0_i32 = arith.constant 0 : i32
    %c0_i32_0 = arith.constant 0 : i32
    %c0_i32_1 = arith.constant 0 : i32
    return %c0_i32, %c0_i32_0 : i32, i32
  }
  func.func @transform_2(%arg0: i32) -> (i32, i32) {
    %c0_i32 = arith.constant 0 : i32
    %c0_i32_0 = arith.constant 0 : i32
    %c0_i32_1 = arith.constant 0 : i32
    return %c0_i32, %c0_i32_0 : i32, i32
  }
  func.func @transform_3(%arg0: i32) -> (i32, i32) {
    %c0_i32 = arith.constant 0 : i32
    %c0_i32_0 = arith.constant 0 : i32
    %c0_i32_1 = arith.constant 0 : i32
    return %c0_i32, %c0_i32_0 : i32, i32
  }
  func.func @transform_4(%arg0: i32) -> (i32, i32, i32) {
    %c0_i32 = arith.constant 0 : i32
    %c0_i32_0 = arith.constant 0 : i32
    %c0_i32_1 = arith.constant 0 : i32
    return %arg0, %c0_i32, %c0_i32_0 : i32, i32, i32
  }
}

module attributes {stable_mosaic.version = 11 : i64} {
  func.func @kernel(%arg0: i32, %arg1: i32, %arg2: memref<1x16x96xbf16, #tpu.memory_space<vmem>>, %arg3: memref<1x16x32xbf16, #tpu.memory_space<vmem>>) attributes {dimension_semantics = [#tpu.dimension_semantics<parallel>, #tpu.dimension_semantics<arbitrary>], iteration_bounds = array<i64: 2, 1>, scalar_prefetch = 0 : i64, scratch_operands = 0 : i64, tpu.core_type = #tpu.core_type<tc>, window_params = [{transform_indices = @transform_0, window_bounds = array<i64: 1, 16, 96>}, {transform_indices = @transform_1, window_bounds = array<i64: 1, 16, 32>}]} {
    %c16_i32 = arith.constant 16 : i32
    %0 = arith.muli %arg1, %c16_i32 : i32
    %1 = tpu.assume_multiple %0, 16 : i32
    %2 = tpu.iota {dimensions = array<i32: 1>} : vector<16x16xi32>
    %c5_i32 = arith.constant 5 : i32
    %3 = vector.broadcast %c5_i32 : i32 to vector<16x16xi32>
    %4 = arith.cmpi slt, %2, %3 : vector<16x16xi32>
    %c0 = arith.constant 0 : index
    %5 = arith.index_cast %1 : i32 to index
    %c0_0 = arith.constant 0 : index
    %6 = vector.load %arg2[%c0, %5, %c0_0] : memref<1x16x96xbf16, #tpu.memory_space<vmem>>, vector<1x16x16xbf16>
    %7 = vector.shape_cast %6 : vector<1x16x16xbf16> to vector<16x16xbf16>
    %c0_1 = arith.constant 0 : index
    %c0_2 = arith.constant 0 : index
    %c32 = arith.constant 32 : index
    %8 = vector.load %arg2[%c0_1, %c0_2, %c32] : memref<1x16x96xbf16, #tpu.memory_space<vmem>>, vector<1x16x16xbf16>
    %9 = vector.shape_cast %8 : vector<1x16x16xbf16> to vector<16x16xbf16>
    %c0_3 = arith.constant 0 : index
    %c0_4 = arith.constant 0 : index
    %c64 = arith.constant 64 : index
    %10 = vector.load %arg2[%c0_3, %c0_4, %c64] : memref<1x16x96xbf16, #tpu.memory_space<vmem>>, vector<1x16x16xbf16>
    %11 = vector.shape_cast %10 : vector<1x16x16xbf16> to vector<16x16xbf16>
    %12 = arith.extf %7 : vector<16x16xbf16> to vector<16x16xf32>
    %cst = arith.constant 2.500000e-01 : f32
    %13 = vector.broadcast %cst : f32 to vector<16x16xf32>
    %14 = arith.mulf %12, %13 : vector<16x16xf32>
    %15 = arith.truncf %14 : vector<16x16xf32> to vector<16x16xbf16>
    %cst_5 = arith.constant dense<0.000000e+00> : vector<16x16xf32>
    %16 = tpu.matmul %15, %9, %cst_5 {dimension_numbers = #tpu.dot_dimension_numbers<[1], [1], [0], [0], [0, 0, 1, 0], [], []>} : vector<16x16xbf16>, vector<16x16xbf16>, vector<16x16xf32> -> vector<16x16xf32>
    %cst_6 = arith.constant -1.000000e+30 : f32
    %17 = vector.broadcast %cst_6 : f32 to vector<16x16xf32>
    %18 = arith.select %4, %16, %17 : vector<16x16xi1>, vector<16x16xf32>
    %cst_7 = arith.constant dense<0xFF800000> : vector<16xf32>
    %19 = vector.multi_reduction <maximumf>, %18, %cst_7 [1] : vector<16x16xf32> to vector<16xf32>
    %20 = vector.shape_cast %19 : vector<16xf32> to vector<16x1xf32>
    %21 = vector.broadcast %20 : vector<16x1xf32> to vector<16x16xf32>
    %22 = arith.subf %18, %21 : vector<16x16xf32>
    %23 = math.exp %22 : vector<16x16xf32>
    %cst_8 = arith.constant dense<0.000000e+00> : vector<16xf32>
    %24 = vector.multi_reduction <add>, %23, %cst_8 [1] : vector<16x16xf32> to vector<16xf32>
    %25 = vector.shape_cast %24 : vector<16xf32> to vector<16x1xf32>
    %26 = tpu.reciprocal %25 {approx = true} : vector<16x1xf32> -> vector<16x1xf32>
    %27 = vector.broadcast %26 : vector<16x1xf32> to vector<16x16xf32>
    %28 = arith.mulf %23, %27 : vector<16x16xf32>
    %29 = arith.truncf %28 : vector<16x16xf32> to vector<16x16xbf16>
    %cst_9 = arith.constant dense<0.000000e+00> : vector<16x16xf32>
    %30 = tpu.matmul %29, %11, %cst_9 {dimension_numbers = #tpu.dot_dimension_numbers<[1], [0], [0], [1], [0, 0, 1, 1], [], []>} : vector<16x16xbf16>, vector<16x16xbf16>, vector<16x16xf32> -> vector<16x16xf32>
    %c0_10 = arith.constant 0 : index
    %31 = arith.index_cast %1 : i32 to index
    %c16 = arith.constant 16 : index
    %32 = vector.load %arg2[%c0_10, %31, %c16] : memref<1x16x96xbf16, #tpu.memory_space<vmem>>, vector<1x16x16xbf16>
    %33 = vector.shape_cast %32 : vector<1x16x16xbf16> to vector<16x16xbf16>
    %c0_11 = arith.constant 0 : index
    %c0_12 = arith.constant 0 : index
    %c48 = arith.constant 48 : index
    %34 = vector.load %arg2[%c0_11, %c0_12, %c48] : memref<1x16x96xbf16, #tpu.memory_space<vmem>>, vector<1x16x16xbf16>
    %35 = vector.shape_cast %34 : vector<1x16x16xbf16> to vector<16x16xbf16>
    %c0_13 = arith.constant 0 : index
    %c0_14 = arith.constant 0 : index
    %c80 = arith.constant 80 : index
    %36 = vector.load %arg2[%c0_13, %c0_14, %c80] : memref<1x16x96xbf16, #tpu.memory_space<vmem>>, vector<1x16x16xbf16>
    %37 = vector.shape_cast %36 : vector<1x16x16xbf16> to vector<16x16xbf16>
    %38 = arith.extf %33 : vector<16x16xbf16> to vector<16x16xf32>
    %cst_15 = arith.constant 2.500000e-01 : f32
    %39 = vector.broadcast %cst_15 : f32 to vector<16x16xf32>
    %40 = arith.mulf %38, %39 : vector<16x16xf32>
    %41 = arith.truncf %40 : vector<16x16xf32> to vector<16x16xbf16>
    %cst_16 = arith.constant dense<0.000000e+00> : vector<16x16xf32>
    %42 = tpu.matmul %41, %35, %cst_16 {dimension_numbers = #tpu.dot_dimension_numbers<[1], [1], [0], [0], [0, 0, 1, 0], [], []>} : vector<16x16xbf16>, vector<16x16xbf16>, vector<16x16xf32> -> vector<16x16xf32>
    %cst_17 = arith.constant -1.000000e+30 : f32
    %43 = vector.broadcast %cst_17 : f32 to vector<16x16xf32>
    %44 = arith.select %4, %42, %43 : vector<16x16xi1>, vector<16x16xf32>
    %cst_18 = arith.constant dense<0xFF800000> : vector<16xf32>
    %45 = vector.multi_reduction <maximumf>, %44, %cst_18 [1] : vector<16x16xf32> to vector<16xf32>
    %46 = vector.shape_cast %45 : vector<16xf32> to vector<16x1xf32>
    %47 = vector.broadcast %46 : vector<16x1xf32> to vector<16x16xf32>
    %48 = arith.subf %44, %47 : vector<16x16xf32>
    %49 = math.exp %48 : vector<16x16xf32>
    %cst_19 = arith.constant dense<0.000000e+00> : vector<16xf32>
    %50 = vector.multi_reduction <add>, %49, %cst_19 [1] : vector<16x16xf32> to vector<16xf32>
    %51 = vector.shape_cast %50 : vector<16xf32> to vector<16x1xf32>
    %52 = tpu.reciprocal %51 {approx = true} : vector<16x1xf32> -> vector<16x1xf32>
    %53 = vector.broadcast %52 : vector<16x1xf32> to vector<16x16xf32>
    %54 = arith.mulf %49, %53 : vector<16x16xf32>
    %55 = arith.truncf %54 : vector<16x16xf32> to vector<16x16xbf16>
    %cst_20 = arith.constant dense<0.000000e+00> : vector<16x16xf32>
    %56 = tpu.matmul %55, %37, %cst_20 {dimension_numbers = #tpu.dot_dimension_numbers<[1], [0], [0], [1], [0, 0, 1, 1], [], []>} : vector<16x16xbf16>, vector<16x16xbf16>, vector<16x16xf32> -> vector<16x16xf32>
    %57 = tpu.concatenate %30, %56 in 1 : vector<16x16xf32>, vector<16x16xf32> -> vector<16x32xf32>
    %58 = arith.truncf %57 : vector<16x32xf32> to vector<16x32xbf16>
    %c0_21 = arith.constant 0 : index
    %c0_22 = arith.constant 0 : index
    %c0_23 = arith.constant 0 : index
    %59 = vector.load %arg3[%c0_21, %c0_22, %c0_23] : memref<1x16x32xbf16, #tpu.memory_space<vmem>>, vector<1x16x32xbf16>
    %60 = vector.shape_cast %59 : vector<1x16x32xbf16> to vector<16x32xbf16>
    %61 = vector.shape_cast %58 : vector<16x32xbf16> to vector<1x16x32xbf16>
    tpu.vector_store %arg3[%c0_21, %c0_22, %c0_23], %61 {strides = array<i32>} : memref<1x16x32xbf16, #tpu.memory_space<vmem>>, vector<1x16x32xbf16>,
    return
  }
  func.func @transform_0(%arg0: i32, %arg1: i32) -> (i32, i32, i32) {
    %c0_i32 = arith.constant 0 : i32
    %c0_i32_0 = arith.constant 0 : i32
    %c0_i32_1 = arith.constant 0 : i32
    return %arg0, %c0_i32, %c0_i32_0 : i32, i32, i32
  }
  func.func @transform_1(%arg0: i32, %arg1: i32) -> (i32, i32, i32) {
    %c0_i32 = arith.constant 0 : i32
    %c0_i32_0 = arith.constant 0 : i32
    return %arg0, %arg1, %c0_i32 : i32, i32, i32
  }
}

module attributes {stable_mosaic.version = 11 : i64} {
  func.func @kernel(%arg0: i32, %arg1: i32, %arg2: memref<32x32xbf16, #tpu.memory_space<vmem>>, %arg3: memref<32x32xbf16, #tpu.memory_space<vmem>>, %arg4: memref<1x32xf32, #tpu.memory_space<vmem>>, %arg5: memref<32x32xbf16, #tpu.memory_space<vmem>>, %arg6: memref<32x32xbf16, #tpu.memory_space<vmem>>) attributes {dimension_semantics = [#tpu.dimension_semantics<parallel>, #tpu.dimension_semantics<parallel>], iteration_bounds = array<i64: 1, 1>, scalar_prefetch = 0 : i64, scratch_operands = 0 : i64, tpu.core_type = #tpu.core_type<tc>, window_params = [{transform_indices = @transform_0, window_bounds = array<i64: 32, 32>}, {transform_indices = @transform_1, window_bounds = array<i64: 32, 32>}, {transform_indices = @transform_2, window_bounds = array<i64: 1, 32>}, {transform_indices = @transform_3, window_bounds = array<i64: 32, 32>}, {transform_indices = @transform_4, window_bounds = array<i64: 32, 32>}]} {
    %c0 = arith.constant 0 : index
    %c0_0 = arith.constant 0 : index
    %0 = vector.load %arg2[%c0, %c0_0] : memref<32x32xbf16, #tpu.memory_space<vmem>>, vector<32x32xbf16>
    %1 = arith.extf %0 : vector<32x32xbf16> to vector<32x32xf32>
    %2 = arith.truncf %1 : vector<32x32xf32> to vector<32x32xbf16>
    %c0_1 = arith.constant 0 : index
    %c0_2 = arith.constant 0 : index
    %3 = vector.load %arg3[%c0_1, %c0_2] : memref<32x32xbf16, #tpu.memory_space<vmem>>, vector<32x32xbf16>
    %cst = arith.constant dense<0.000000e+00> : vector<32x32xf32>
    %4 = tpu.matmul %2, %3, %cst {dimension_numbers = #tpu.dot_dimension_numbers<[1], [0], [0], [1], [0, 0, 1, 1], [], []>} : vector<32x32xbf16>, vector<32x32xbf16>, vector<32x32xf32> -> vector<32x32xf32>
    %c0_3 = arith.constant 0 : index
    %c0_4 = arith.constant 0 : index
    %5 = vector.load %arg4[%c0_3, %c0_4] : memref<1x32xf32, #tpu.memory_space<vmem>>, vector<1x32xf32>
    %6 = vector.broadcast %5 : vector<1x32xf32> to vector<32x32xf32>
    %7 = arith.addf %4, %6 : vector<32x32xf32>
    %c0_5 = arith.constant 0 : index
    %c0_6 = arith.constant 0 : index
    %8 = vector.load %arg5[%c0_5, %c0_6] : memref<32x32xbf16, #tpu.memory_space<vmem>>, vector<32x32xbf16>
    %9 = arith.extf %8 : vector<32x32xbf16> to vector<32x32xf32>
    %10 = arith.addf %7, %9 : vector<32x32xf32>
    %11 = arith.truncf %10 : vector<32x32xf32> to vector<32x32xbf16>
    %c0_7 = arith.constant 0 : index
    %c0_8 = arith.constant 0 : index
    %12 = vector.load %arg6[%c0_7, %c0_8] : memref<32x32xbf16, #tpu.memory_space<vmem>>, vector<32x32xbf16>
    tpu.vector_store %arg6[%c0_7, %c0_8], %11 {strides = array<i32>} : memref<32x32xbf16, #tpu.memory_space<vmem>>, vector<32x32xbf16>,
    return
  }
  func.func @transform_0(%arg0: i32, %arg1: i32) -> (i32, i32) {
    %c0_i32 = arith.constant 0 : i32
    %c0_i32_0 = arith.constant 0 : i32
    return %arg0, %c0_i32 : i32, i32
  }
  func.func @transform_1(%arg0: i32, %arg1: i32) -> (i32, i32) {
    %c0_i32 = arith.constant 0 : i32
    %c0_i32_0 = arith.constant 0 : i32
    return %c0_i32, %arg1 : i32, i32
  }
  func.func @transform_2(%arg0: i32, %arg1: i32) -> (i32, i32) {
    %c0_i32 = arith.constant 0 : i32
    %c0_i32_0 = arith.constant 0 : i32
    return %c0_i32, %arg1 : i32, i32
  }
  func.func @transform_3(%arg0: i32, %arg1: i32) -> (i32, i32) {
    %c0_i32 = arith.constant 0 : i32
    return %arg0, %arg1 : i32, i32
  }
  func.func @transform_4(%arg0: i32, %arg1: i32) -> (i32, i32) {
    %c0_i32 = arith.constant 0 : i32
    return %arg0, %arg1 : i32, i32
  }
}

module attributes {stable_mosaic.version = 11 : i64} {
  func.func @kernel(%arg0: i32, %arg1: i32, %arg2: memref<32x32xbf16, #tpu.memory_space<vmem>>, %arg3: memref<32x128xbf16, #tpu.memory_space<vmem>>, %arg4: memref<1x32xf32, #tpu.memory_space<vmem>>, %arg5: memref<1x32xf32, #tpu.memory_space<vmem>>, %arg6: memref<1x128xf32, #tpu.memory_space<vmem>>, %arg7: memref<32x128xbf16, #tpu.memory_space<vmem>>) attributes {dimension_semantics = [#tpu.dimension_semantics<parallel>, #tpu.dimension_semantics<parallel>], iteration_bounds = array<i64: 1, 1>, scalar_prefetch = 0 : i64, scratch_operands = 0 : i64, tpu.core_type = #tpu.core_type<tc>, window_params = [{transform_indices = @transform_0, window_bounds = array<i64: 32, 32>}, {transform_indices = @transform_1, window_bounds = array<i64: 32, 128>}, {pipeline_mode = #tpu.pipeline_mode<synchronous>, transform_indices = @transform_2, window_bounds = array<i64: 1, 32>}, {pipeline_mode = #tpu.pipeline_mode<synchronous>, transform_indices = @transform_3, window_bounds = array<i64: 1, 32>}, {transform_indices = @transform_4, window_bounds = array<i64: 1, 128>}, {transform_indices = @transform_5, window_bounds = array<i64: 32, 128>}]} {
    %c0 = arith.constant 0 : index
    %c0_0 = arith.constant 0 : index
    %0 = vector.load %arg2[%c0, %c0_0] : memref<32x32xbf16, #tpu.memory_space<vmem>>, vector<32x32xbf16>
    %1 = arith.extf %0 : vector<32x32xbf16> to vector<32x32xf32>
    %cst = arith.constant dense<0.000000e+00> : vector<32xf32>
    %2 = vector.multi_reduction <add>, %1, %cst [1] : vector<32x32xf32> to vector<32xf32>
    %3 = vector.shape_cast %2 : vector<32xf32> to vector<32x1xf32>
    %cst_1 = arith.constant 3.200000e+01 : f32
    %4 = vector.broadcast %cst_1 : f32 to vector<32x1xf32>
    %5 = arith.divf %3, %4 : vector<32x1xf32>
    %6 = vector.broadcast %5 : vector<32x1xf32> to vector<32x32xf32>
    %7 = arith.subf %1, %6 : vector<32x32xf32>
    %8 = arith.mulf %7, %7 : vector<32x32xf32>
    %cst_2 = arith.constant dense<0.000000e+00> : vector<32xf32>
    %9 = vector.multi_reduction <add>, %8, %cst_2 [1] : vector<32x32xf32> to vector<32xf32>
    %10 = vector.shape_cast %9 : vector<32xf32> to vector<32x1xf32>
    %cst_3 = arith.constant 3.200000e+01 : f32
    %11 = vector.broadcast %cst_3 : f32 to vector<32x1xf32>
    %12 = arith.divf %10, %11 : vector<32x1xf32>
    %13 = vector.broadcast %5 : vector<32x1xf32> to vector<32x32xf32>
    %14 = arith.subf %1, %13 : vector<32x32xf32>
    %cst_4 = arith.constant 9.99999974E-6 : f32
    %15 = vector.broadcast %cst_4 : f32 to vector<32x1xf32>
    %16 = arith.addf %12, %15 : vector<32x1xf32>
    %17 = math.rsqrt %16 : vector<32x1xf32>
    %18 = vector.broadcast %17 : vector<32x1xf32> to vector<32x32xf32>
    %19 = arith.mulf %14, %18 : vector<32x32xf32>
    %c0_5 = arith.constant 0 : index
    %c0_6 = arith.constant 0 : index
    %20 = vector.load %arg4[%c0_5, %c0_6] : memref<1x32xf32, #tpu.memory_space<vmem>>, vector<1x32xf32>
    %21 = vector.broadcast %20 : vector<1x32xf32> to vector<32x32xf32>
    %22 = arith.mulf %19, %21 : vector<32x32xf32>
    %c0_7 = arith.constant 0 : index
    %c0_8 = arith.constant 0 : index
    %23 = vector.load %arg5[%c0_7, %c0_8] : memref<1x32xf32, #tpu.memory_space<vmem>>, vector<1x32xf32>
    %24 = vector.broadcast %23 : vector<1x32xf32> to vector<32x32xf32>
    %25 = arith.addf %22, %24 : vector<32x32xf32>
    %26 = arith.truncf %25 : vector<32x32xf32> to vector<32x32xbf16>
    %c0_9 = arith.constant 0 : index
    %c0_10 = arith.constant 0 : index
    %27 = vector.load %arg3[%c0_9, %c0_10] : memref<32x128xbf16, #tpu.memory_space<vmem>>, vector<32x128xbf16>
    %cst_11 = arith.constant dense<0.000000e+00> : vector<32x128xf32>
    %28 = tpu.matmul %26, %27, %cst_11 {dimension_numbers = #tpu.dot_dimension_numbers<[1], [0], [0], [1], [0, 0, 1, 1], [], []>} : vector<32x32xbf16>, vector<32x128xbf16>, vector<32x128xf32> -> vector<32x128xf32>
    %c0_12 = arith.constant 0 : index
    %c0_13 = arith.constant 0 : index
    %29 = vector.load %arg6[%c0_12, %c0_13] : memref<1x128xf32, #tpu.memory_space<vmem>>, vector<1x128xf32>
    %30 = vector.broadcast %29 : vector<1x128xf32> to vector<32x128xf32>
    %31 = arith.addf %28, %30 : vector<32x128xf32>
    %cst_14 = arith.constant 1.702000e+00 : f32
    %32 = vector.broadcast %cst_14 : f32 to vector<32x128xf32>
    %33 = arith.mulf %32, %31 : vector<32x128xf32>
    %34 = arith.negf %33 : vector<32x128xf32>
    %35 = math.exp %34 : vector<32x128xf32>
    %cst_15 = arith.constant 1.000000e+00 : f32
    %36 = vector.broadcast %cst_15 : f32 to vector<32x128xf32>
    %37 = arith.addf %36, %35 : vector<32x128xf32>
    %38 = arith.divf %36, %37 : vector<32x128xf32>
    %39 = arith.mulf %31, %38 : vector<32x128xf32>
    %40 = arith.truncf %39 : vector<32x128xf32> to vector<32x128xbf16>
    %c0_16 = arith.constant 0 : index
    %c0_17 = arith.constant 0 : index
    %41 = vector.load %arg7[%c0_16, %c0_17] : memref<32x128xbf16, #tpu.memory_space<vmem>>, vector<32x128xbf16>
    tpu.vector_store %arg7[%c0_16, %c0_17], %40 {strides = array<i32>} : memref<32x128xbf16, #tpu.memory_space<vmem>>, vector<32x128xbf16>,
    return
  }
  func.func @transform_0(%arg0: i32, %arg1: i32) -> (i32, i32) {
    %c0_i32 = arith.constant 0 : i32
    %c0_i32_0 = arith.constant 0 : i32
    return %arg0, %c0_i32 : i32, i32
  }
  func.func @transform_1(%arg0: i32, %arg1: i32) -> (i32, i32) {
    %c0_i32 = arith.constant 0 : i32
    %c0_i32_0 = arith.constant 0 : i32
    return %c0_i32, %arg1 : i32, i32
  }
  func.func @transform_2(%arg0: i32, %arg1: i32) -> (i32, i32) {
    %c0_i32 = arith.constant 0 : i32
    %c0_i32_0 = arith.constant 0 : i32
    %c0_i32_1 = arith.constant 0 : i32
    return %c0_i32, %c0_i32_0 : i32, i32
  }
  func.func @transform_3(%arg0: i32, %arg1: i32) -> (i32, i32) {
    %c0_i32 = arith.constant 0 : i32
    %c0_i32_0 = arith.constant 0 : i32
    %c0_i32_1 = arith.constant 0 : i32
    return %c0_i32, %c0_i32_0 : i32, i32
  }
  func.func @transform_4(%arg0: i32, %arg1: i32) -> (i32, i32) {
    %c0_i32 = arith.constant 0 : i32
    %c0_i32_0 = arith.constant 0 : i32
    return %c0_i32, %arg1 : i32, i32
  }
  func.func @transform_5(%arg0: i32, %arg1: i32) -> (i32, i32) {
    %c0_i32 = arith.constant 0 : i32
    return %arg0, %arg1 : i32, i32
  }
}

module attributes {stable_mosaic.version = 11 : i64} {
  func.func @kernel(%arg0: i32, %arg1: i32, %arg2: memref<32x128xbf16, #tpu.memory_space<vmem>>, %arg3: memref<128x32xbf16, #tpu.memory_space<vmem>>, %arg4: memref<1x32xf32, #tpu.memory_space<vmem>>, %arg5: memref<32x32xbf16, #tpu.memory_space<vmem>>, %arg6: memref<32x32xbf16, #tpu.memory_space<vmem>>) attributes {dimension_semantics = [#tpu.dimension_semantics<parallel>, #tpu.dimension_semantics<parallel>], iteration_bounds = array<i64: 1, 1>, scalar_prefetch = 0 : i64, scratch_operands = 0 : i64, tpu.core_type = #tpu.core_type<tc>, window_params = [{transform_indices = @transform_0, window_bounds = array<i64: 32, 128>}, {transform_indices = @transform_1, window_bounds = array<i64: 128, 32>}, {transform_indices = @transform_2, window_bounds = array<i64: 1, 32>}, {transform_indices = @transform_3, window_bounds = array<i64: 32, 32>}, {transform_indices = @transform_4, window_bounds = array<i64: 32, 32>}]} {
    %c0 = arith.constant 0 : index
    %c0_0 = arith.constant 0 : index
    %0 = vector.load %arg2[%c0, %c0_0] : memref<32x128xbf16, #tpu.memory_space<vmem>>, vector<32x128xbf16>
    %1 = arith.extf %0 : vector<32x128xbf16> to vector<32x128xf32>
    %2 = arith.truncf %1 : vector<32x128xf32> to vector<32x128xbf16>
    %c0_1 = arith.constant 0 : index
    %c0_2 = arith.constant 0 : index
    %3 = vector.load %arg3[%c0_1, %c0_2] : memref<128x32xbf16, #tpu.memory_space<vmem>>, vector<128x32xbf16>
    %cst = arith.constant dense<0.000000e+00> : vector<32x32xf32>
    %4 = tpu.matmul %2, %3, %cst {dimension_numbers = #tpu.dot_dimension_numbers<[1], [0], [0], [1], [0, 0, 1, 1], [], []>} : vector<32x128xbf16>, vector<128x32xbf16>, vector<32x32xf32> -> vector<32x32xf32>
    %c0_3 = arith.constant 0 : index
    %c0_4 = arith.constant 0 : index
    %5 = vector.load %arg4[%c0_3, %c0_4] : memref<1x32xf32, #tpu.memory_space<vmem>>, vector<1x32xf32>
    %6 = vector.broadcast %5 : vector<1x32xf32> to vector<32x32xf32>
    %7 = arith.addf %4, %6 : vector<32x32xf32>
    %c0_5 = arith.constant 0 : index
    %c0_6 = arith.constant 0 : index
    %8 = vector.load %arg5[%c0_5, %c0_6] : memref<32x32xbf16, #tpu.memory_space<vmem>>, vector<32x32xbf16>
    %9 = arith.extf %8 : vector<32x32xbf16> to vector<32x32xf32>
    %10 = arith.addf %7, %9 : vector<32x32xf32>
    %11 = arith.truncf %10 : vector<32x32xf32> to vector<32x32xbf16>
    %c0_7 = arith.constant 0 : index
    %c0_8 = arith.constant 0 : index
    %12 = vector.load %arg6[%c0_7, %c0_8] : memref<32x32xbf16, #tpu.memory_space<vmem>>, vector<32x32xbf16>
    tpu.vector_store %arg6[%c0_7, %c0_8], %11 {strides = array<i32>} : memref<32x32xbf16, #tpu.memory_space<vmem>>, vector<32x32xbf16>,
    return
  }
  func.func @transform_0(%arg0: i32, %arg1: i32) -> (i32, i32) {
    %c0_i32 = arith.constant 0 : i32
    %c0_i32_0 = arith.constant 0 : i32
    return %arg0, %c0_i32 : i32, i32
  }
  func.func @transform_1(%arg0: i32, %arg1: i32) -> (i32, i32) {
    %c0_i32 = arith.constant 0 : i32
    %c0_i32_0 = arith.constant 0 : i32
    return %c0_i32, %arg1 : i32, i32
  }
  func.func @transform_2(%arg0: i32, %arg1: i32) -> (i32, i32) {
    %c0_i32 = arith.constant 0 : i32
    %c0_i32_0 = arith.constant 0 : i32
    return %c0_i32, %arg1 : i32, i32
  }
  func.func @transform_3(%arg0: i32, %arg1: i32) -> (i32, i32) {
    %c0_i32 = arith.constant 0 : i32
    return %arg0, %arg1 : i32, i32
  }
  func.func @transform_4(%arg0: i32, %arg1: i32) -> (i32, i32) {
    %c0_i32 = arith.constant 0 : i32
    return %arg0, %arg1 : i32, i32
  }
}

module attributes {stable_mosaic.version = 11 : i64} {
  func.func @kernel(%arg0: i32, %arg1: i32, %arg2: memref<2x32xbf16, #tpu.memory_space<vmem>>, %arg3: memref<32x16xbf16, #tpu.memory_space<vmem>>, %arg4: memref<1x32xf32, #tpu.memory_space<vmem>>, %arg5: memref<1x32xf32, #tpu.memory_space<vmem>>, %arg6: memref<2x16xf32, #tpu.memory_space<vmem>>) attributes {dimension_semantics = [#tpu.dimension_semantics<parallel>, #tpu.dimension_semantics<parallel>], iteration_bounds = array<i64: 1, 1>, scalar_prefetch = 0 : i64, scratch_operands = 0 : i64, tpu.core_type = #tpu.core_type<tc>, window_params = [{transform_indices = @transform_0, window_bounds = array<i64: 2, 32>}, {transform_indices = @transform_1, window_bounds = array<i64: 32, 16>}, {pipeline_mode = #tpu.pipeline_mode<synchronous>, transform_indices = @transform_2, window_bounds = array<i64: 1, 32>}, {pipeline_mode = #tpu.pipeline_mode<synchronous>, transform_indices = @transform_3, window_bounds = array<i64: 1, 32>}, {transform_indices = @transform_4, window_bounds = array<i64: 2, 16>}]} {
    %c0 = arith.constant 0 : index
    %c0_0 = arith.constant 0 : index
    %0 = vector.load %arg2[%c0, %c0_0] : memref<2x32xbf16, #tpu.memory_space<vmem>>, vector<2x32xbf16>
    %1 = arith.extf %0 : vector<2x32xbf16> to vector<2x32xf32>
    %cst = arith.constant dense<0.000000e+00> : vector<2xf32>
    %2 = vector.multi_reduction <add>, %1, %cst [1] : vector<2x32xf32> to vector<2xf32>
    %3 = vector.shape_cast %2 : vector<2xf32> to vector<2x1xf32>
    %cst_1 = arith.constant 3.200000e+01 : f32
    %4 = vector.broadcast %cst_1 : f32 to vector<2x1xf32>
    %5 = arith.divf %3, %4 : vector<2x1xf32>
    %6 = vector.broadcast %5 : vector<2x1xf32> to vector<2x32xf32>
    %7 = arith.subf %1, %6 : vector<2x32xf32>
    %8 = arith.mulf %7, %7 : vector<2x32xf32>
    %cst_2 = arith.constant dense<0.000000e+00> : vector<2xf32>
    %9 = vector.multi_reduction <add>, %8, %cst_2 [1] : vector<2x32xf32> to vector<2xf32>
    %10 = vector.shape_cast %9 : vector<2xf32> to vector<2x1xf32>
    %cst_3 = arith.constant 3.200000e+01 : f32
    %11 = vector.broadcast %cst_3 : f32 to vector<2x1xf32>
    %12 = arith.divf %10, %11 : vector<2x1xf32>
    %13 = vector.broadcast %5 : vector<2x1xf32> to vector<2x32xf32>
    %14 = arith.subf %1, %13 : vector<2x32xf32>
    %cst_4 = arith.constant 9.99999974E-6 : f32
    %15 = vector.broadcast %cst_4 : f32 to vector<2x1xf32>
    %16 = arith.addf %12, %15 : vector<2x1xf32>
    %17 = math.rsqrt %16 : vector<2x1xf32>
    %18 = vector.broadcast %17 : vector<2x1xf32> to vector<2x32xf32>
    %19 = arith.mulf %14, %18 : vector<2x32xf32>
    %c0_5 = arith.constant 0 : index
    %c0_6 = arith.constant 0 : index
    %20 = vector.load %arg4[%c0_5, %c0_6] : memref<1x32xf32, #tpu.memory_space<vmem>>, vector<1x32xf32>
    %21 = vector.broadcast %20 : vector<1x32xf32> to vector<2x32xf32>
    %22 = arith.mulf %19, %21 : vector<2x32xf32>
    %c0_7 = arith.constant 0 : index
    %c0_8 = arith.constant 0 : index
    %23 = vector.load %arg5[%c0_7, %c0_8] : memref<1x32xf32, #tpu.memory_space<vmem>>, vector<1x32xf32>
    %24 = vector.broadcast %23 : vector<1x32xf32> to vector<2x32xf32>
    %25 = arith.addf %22, %24 : vector<2x32xf32>
    %26 = arith.truncf %25 : vector<2x32xf32> to vector<2x32xbf16>
    %c0_9 = arith.constant 0 : index
    %c0_10 = arith.constant 0 : index
    %27 = vector.load %arg3[%c0_9, %c0_10] : memref<32x16xbf16, #tpu.memory_space<vmem>>, vector<32x16xbf16>
    %cst_11 = arith.constant dense<0.000000e+00> : vector<2x16xf32>
    %28 = tpu.matmul %26, %27, %cst_11 {dimension_numbers = #tpu.dot_dimension_numbers<[1], [0], [0], [1], [0, 0, 1, 1], [], []>} : vector<2x32xbf16>, vector<32x16xbf16>, vector<2x16xf32> -> vector<2x16xf32>
    %c0_12 = arith.constant 0 : index
    %c0_13 = arith.constant 0 : index
    %29 = vector.load %arg6[%c0_12, %c0_13] : memref<2x16xf32, #tpu.memory_space<vmem>>, vector<2x16xf32>
    tpu.vector_store %arg6[%c0_12, %c0_13], %28 {strides = array<i32>} : memref<2x16xf32, #tpu.memory_space<vmem>>, vector<2x16xf32>,
    return
  }
  func.func @transform_0(%arg0: i32, %arg1: i32) -> (i32, i32) {
    %c0_i32 = arith.constant 0 : i32
    %c0_i32_0 = arith.constant 0 : i32
    return %arg0, %c0_i32 : i32, i32
  }
  func.func @transform_1(%arg0: i32, %arg1: i32) -> (i32, i32) {
    %c0_i32 = arith.constant 0 : i32
    %c0_i32_0 = arith.constant 0 : i32
    return %c0_i32, %arg1 : i32, i32
  }
  func.func @transform_2(%arg0: i32, %arg1: i32) -> (i32, i32) {
    %c0_i32 = arith.constant 0 : i32
    %c0_i32_0 = arith.constant 0 : i32
    %c0_i32_1 = arith.constant 0 : i32
    return %c0_i32, %c0_i32_0 : i32, i32
  }
  func.func @transform_3(%arg0: i32, %arg1: i32) -> (i32, i32) {
    %c0_i32 = arith.constant 0 : i32
    %c0_i32_0 = arith.constant 0 : i32
    %c0_i32_1 = arith.constant 0 : i32
    return %c0_i32, %c0_i32_0 : i32, i32
  }
  func.func @transform_4(%arg0: i32, %arg1: i32) -> (i32, i32) {
    %c0_i32 = arith.constant 0 : i32
    return %arg0, %arg1 : i32, i32
  }
}

</mosaic_0001>

<llo_original>
// kernel: image_clip_forward.14
$region0: #{image_clip_forward.14}
  #allocation0 [shape = 'u32[]', space=smem, size = 0x4, offset = 0x4, fixed_abs, tag = 'smem constant byte address 0x4 - core index']
  #allocation1 [shape = 'u32[144,128]{1,0:T(1,128)}', space=vmem, size = 0x12000, scoped, tag = 'internal scratch']
  %s0 = inlined_call_operand.vmem [shape: bf16[2,16,32], index: 0, kind: input, shape index: {}]
  %s1 = inlined_call_operand.vmem [shape: f32[16,32], index: 1, kind: input, shape index: {}]
  %s2 = inlined_call_operand.vmem [shape: f32[1,32], index: 2, kind: input, shape index: {}]
  %s3 = inlined_call_operand.vmem [shape: f32[1,32], index: 3, kind: input, shape index: {}]
  %s4 = inlined_call_operand.vmem [shape: bf16[2,16,32], index: 4, kind: output, shape index: {}]
  %s5 = sld [smem:[#allocation0]]
  $region49: #{image_clip_forward.14} parent=0
    _
  %s7 = ssub.s32 1, %s5
  %s8 = scalar_select 0, %s7, %s5
  loop: start=0, step=1, limit=4
  $region2: #{image_clip_forward.14} parent=0 // loop_pre_header
    _
  $region3: #{image_clip_forward.14} parent=0 // loop_header
    %s10 = sphi 0, %s14
    %p11 = scmp.ge.s32.totalorder %s10, 4
    %s20 = sphi 0, %s22
    %s23 = sphi 0, %s20
    %s24 = sphi 0, %s23
    %s40 = sphi 0, %s24
    %s44 = sphi 0, %s44
    %s46 = sphi 0, %s44
    %s47 = sphi 0, %s46
    %s61 = sphi 0, %s47
    %s65 = sphi 0, %s65
    %s67 = sphi 0, %s65
    %s68 = sphi 0, %s67
    %s82 = sphi 0, %s68
    %s86 = sphi 0, %s86
    %s88 = sphi 0, %s86
    %s89 = sphi 0, %s88
    %s103 = sphi 0, %s89
    %s109 = sphi 0, %s111
    %s112 = sphi 0, %s109
    %s113 = sphi 0, %s112
    %s129 = sphi 0, %s113
  $region4: #{image_clip_forward.14} parent=0 // loop_header_branch
    %13 = sbr.rel (%p11) target = $region8
  $region5: #{image_clip_forward.14} parent=0 // loop_body
    %s15 = ssub.s32 %s10, 1
    %s16 = ssub.s32 %s10, 2
    %s17 = sadd.s32 %s10, 1
    %s18 = ssub.s32 %s10, %s17
    %p19 = scmp.eq.s32.totalorder %s18, 0
    %s21 = sadd.s32 %s20, 1
    %s22 = scalar_select %p19, %s20, %s21
    %p25 = pneg %p19
    %p26 = scmp.eq.s32.totalorder %s10, 1
    %p27 = por %p25, %p26
    %p28 = scmp.ne.s32.totalorder %s20, %s23
    %p29 = scmp.eq.s32.totalorder %s10, 0
    %p30 = por %p28, %p29
    %p31 = scmp.ne.s32.totalorder %s20, %s23
    %p32 = scmp.eq.s32.totalorder %s15, 1
    %p33 = por %p31, %p32
    %p34 = scmp.ne.s32.totalorder %s23, %s24
    %p35 = scmp.eq.s32.totalorder %s15, 0
    %p36 = por %p34, %p35
    %p37 = scmp.ne.s32.totalorder %s23, %s24
    %p38 = scmp.eq.s32.totalorder %s16, 1
    %p39 = por %p37, %p38
    %p41 = scmp.ne.s32.totalorder %s24, %s40
    %p42 = scmp.eq.s32.totalorder %s16, 0
    %p43 = por %p41, %p42
    %s45 = sadd.s32 %s44, 1
    %p48 = scmp.eq.s32.totalorder %s10, 1
    %p49 = scmp.ne.s32.totalorder %s44, %s46
    %p50 = scmp.eq.s32.totalorder %s10, 0
    %p51 = por %p49, %p50
    %p52 = scmp.ne.s32.totalorder %s44, %s46
    %p53 = scmp.eq.s32.totalorder %s15, 1
    %p54 = por %p52, %p53
    %p55 = scmp.ne.s32.totalorder %s46, %s47
    %p56 = scmp.eq.s32.totalorder %s15, 0
    %p57 = por %p55, %p56
    %p58 = scmp.ne.s32.totalorder %s46, %s47
    %p59 = scmp.eq.s32.totalorder %s16, 1
    %p60 = por %p58, %p59
    %p62 = scmp.ne.s32.totalorder %s47, %s61
    %p63 = scmp.eq.s32.totalorder %s16, 0
    %p64 = por %p62, %p63
    %s66 = sadd.s32 %s65, 1
    %p69 = scmp.eq.s32.totalorder %s10, 1
    %p70 = scmp.ne.s32.totalorder %s65, %s67
    %p71 = scmp.eq.s32.totalorder %s10, 0
    %p72 = por %p70, %p71
    %p73 = scmp.ne.s32.totalorder %s65, %s67
    %p74 = scmp.eq.s32.totalorder %s15, 1
    %p75 = por %p73, %p74
    %p76 = scmp.ne.s32.totalorder %s67, %s68
    %p77 = scmp.eq.s32.totalorder %s15, 0
    %p78 = por %p76, %p77
    %p79 = scmp.ne.s32.totalorder %s67, %s68
    %p80 = scmp.eq.s32.totalorder %s16, 1
    %p81 = por %p79, %p80
    %p83 = scmp.ne.s32.totalorder %s68, %s82
    %p84 = scmp.eq.s32.totalorder %s16, 0
    %p85 = por %p83, %p84
    %s87 = sadd.s32 %s86, 1
    %p90 = scmp.eq.s32.totalorder %s10, 1
    %p91 = scmp.ne.s32.totalorder %s86, %s88
    %p92 = scmp.eq.s32.totalorder %s10, 0
    %p93 = por %p91, %p92
    %p94 = scmp.ne.s32.totalorder %s86, %s88
    %p95 = scmp.eq.s32.totalorder %s15, 1
    %p96 = por %p94, %p95
    %p97 = scmp.ne.s32.totalorder %s88, %s89
    %p98 = scmp.eq.s32.totalorder %s15, 0
    %p99 = por %p97, %p98
    %p100 = scmp.ne.s32.totalorder %s88, %s89
    %p101 = scmp.eq.s32.totalorder %s16, 1
    %p102 = por %p100, %p101
    %p104 = scmp.ne.s32.totalorder %s89, %s103
    %p105 = scmp.eq.s32.totalorder %s16, 0
    %p106 = por %p104, %p105
    %s107 = ssub.s32 %s10, %s17
    %p108 = scmp.eq.s32.totalorder %s107, 0
    %s110 = sadd.s32 %s109, 1
    %s111 = scalar_select %p108, %s109, %s110
    %p114 = pneg %p108
    %p115 = scmp.eq.s32.totalorder %s10, 1
    %p116 = por %p114, %p115
    %p117 = scmp.ne.s32.totalorder %s109, %s112
    %p118 = scmp.eq.s32.totalorder %s10, 0
    %p119 = por %p117, %p118
    %p120 = scmp.ne.s32.totalorder %s109, %s112
    %p121 = scmp.eq.s32.totalorder %s15, 1
    %p122 = por %p120, %p121
    %p123 = scmp.ne.s32.totalorder %s112, %s113
    %p124 = scmp.eq.s32.totalorder %s15, 0
    %p125 = por %p123, %p124
    %p126 = scmp.ne.s32.totalorder %s112, %s113
    %p127 = scmp.eq.s32.totalorder %s16, 1
    %p128 = por %p126, %p127
    %p130 = scmp.ne.s32.totalorder %s113, %s129
    %p131 = scmp.eq.s32.totalorder %s16, 0
    %p132 = por %p130, %p131
    %p133 = scmp.le.s32.totalorder 1, %s10
    %p134 = scmp.lt.s32.totalorder %s10, 3
    %p135 = pnand %p133, %p134
    %p136 = pneg %p135
    // Predicated region
    $region9: #{image_clip_forward.14} parent=5 // pred_check
      _
    $region10: #{image_clip_forward.14} parent=5 // pred_check_branch
      %138 = sbr.rel (%p135) target = $region12
    $region11: #{image_clip_forward.14} parent=5 // pred_region
      %s139 = ssub.s32 %s10, 1
      // Predicated region
      $region13: #{image_clip_forward.14} parent=11 // pred_check
        %p140 = pneg %p57
      $region14: #{image_clip_forward.14} parent=11 // pred_check_branch
        %142 = sbr.rel (%p140) target = $region16
      $region15: #{image_clip_forward.14} parent=11 // pred_region
        _
      $region16: #{image_clip_forward.14} parent=11 // pred_fallthru
        _
      // Predicated region
      $region17: #{image_clip_forward.14} parent=11 // pred_check
        %p143 = pneg %p78
      $region18: #{image_clip_forward.14} parent=11 // pred_check_branch
        %145 = sbr.rel (%p143) target = $region20
      $region19: #{image_clip_forward.14} parent=11 // pred_region
        _
      $region20: #{image_clip_forward.14} parent=11 // pred_fallthru
        _
      // Predicated region
      $region21: #{image_clip_forward.14} parent=11 // pred_check
        %p146 = pneg %p99
      $region22: #{image_clip_forward.14} parent=11 // pred_check_branch
        %148 = sbr.rel (%p146) target = $region24
      $region23: #{image_clip_forward.14} parent=11 // pred_region
        _
      $region24: #{image_clip_forward.14} parent=11 // pred_fallthru
        _
    $region12: #{image_clip_forward.14} parent=5 // pred_fallthru
      _
    %p149 = scmp.lt.s32.totalorder %s10, 2
    // Predicated region
    $region25: #{image_clip_forward.14} parent=5 // pred_check
      %p150 = pneg %p149
    $region26: #{image_clip_forward.14} parent=5 // pred_check_branch
      %152 = sbr.rel (%p150) target = $region28
    $region27: #{image_clip_forward.14} parent=5 // pred_region
      // Predicated region
      $region29: #{image_clip_forward.14} parent=27 // pred_check
        %p153 = pneg %p30
      $region30: #{image_clip_forward.14} parent=27 // pred_check_branch
        %155 = sbr.rel (%p153) target = $region32
      $region31: #{image_clip_forward.14} parent=27 // pred_region
        %p156 = scmp.lt.s32.totalorder %s10, 1
        %s157 = scalar_select %p156, %s10, 1
        %s158 = smul.addr %s157, 2
        %s159 = smul.addr %s158, 4
        %s160 = scalar_lea.vmem %s0, %s159
      $region32: #{image_clip_forward.14} parent=27 // pred_fallthru
        _
    $region28: #{image_clip_forward.14} parent=5 // pred_fallthru
      _
    %p161 = scmp.le.s32.totalorder 1, %s10
    %p162 = scmp.lt.s32.totalorder %s10, 3
    %p163 = pnand %p161, %p162
    %p164 = pneg %p163
    // Predicated region
    $region33: #{image_clip_forward.14} parent=5 // pred_check
      _
    $region34: #{image_clip_forward.14} parent=5 // pred_check_branch
      %166 = sbr.rel (%p163) target = $region36
    $region35: #{image_clip_forward.14} parent=5 // pred_region
      %s167 = ssub.s32 %s10, 1
      %p168 = scmp.lt.s32.totalorder %s15, 1
      %s169 = scalar_select %p168, %s15, 1
      %s170 = smul.addr %s169, 2
      %s171 = smul.addr %s170, 4
      %s172 = scalar_lea.vmem %s0, %s171
      %p173 = pneg %p36
      %p174 = pneg %p33
      %p175 = pneg %p57
      %p176 = pneg %p54
      %p177 = pneg %p78
      %p178 = pneg %p75
      %p179 = pneg %p99
      %p180 = pneg %p96
      %p181 = pneg %p125
      %p182 = pneg %p122
      %p183 = scmp.lt.s32.totalorder %s15, 1
      %s184 = scalar_select %p183, %s15, 1
      %s185 = smul.addr %s184, 2
      %s186 = smul.addr %s185, 4
      %s187 = scalar_lea.vmem %s4, %s186
      %p188 = scmp.lt.s32.totalorder %s15, 1
      %s189 = scalar_select %p188, %s15, 1
      %s190 = smul.addr %s189, 2
      %s191 = smul.addr %s190, 4
      %s192 = scalar_lea.vmem %s0, %s191
      %p193 = scmp.lt.s32.totalorder %s15, 1
      %s194 = scalar_select %p193, %s15, 1
      %s195 = smul.addr %s194, 2
      %s196 = smul.addr %s195, 4
      %s197 = scalar_lea.vmem %s4, %s196
      %v198 = vld [vmem:[%s192] sm:$0xf]
      %v199 = vld [vmem:[%s192 + $0x4] sm:$0xf]
      %v200 = vunpack.c.l.bf16 %v198
      %v201 = vunpack.c.l.bf16 %v199
      %v202 = vld [vmem:[%s1] sm:$0xff]
      %v203 = vld [vmem:[%s1 + $0x8] sm:$0xff]
      %v204 = vadd.f32 %v200, %v202
      %v205 = vadd.f32 %v201, %v203
      %vm206 = vcmask 261120
      %v207 = vsel %vm206, %v204, 0.0
      %208 = vadd.xlane.f32.xlu0 %v207
      %v209 = vpop.xlane.xlu0 %208
      %v210 = vsel %vm206, %v205, 0.0
      %211 = vadd.xlane.f32.xlu0 %v210
      %v212 = vpop.xlane.xlu0 %211
      %v213 = vrcp.pop 32.0
      %v214 = vmul.f32 %v209, %v213
      %v215 = vmul.f32 %v212, %v213
      %v216 = vsub.f32 %v204, %v214
      %v217 = vsub.f32 %v205, %v215
      %v218 = vmul.f32 %v216, %v216
      %v219 = vmul.f32 %v217, %v217
      %v220 = vsel %vm206, %v218, 0.0
      %221 = vadd.xlane.f32.xlu0 %v220
      %v222 = vpop.xlane.xlu0 %221
      %v223 = vsel %vm206, %v219, 0.0
      %224 = vadd.xlane.f32.xlu0 %v223
      %v225 = vpop.xlane.xlu0 %224
      %v226 = vmul.f32 %v222, %v213
      %v227 = vmul.f32 %v225, %v213
      %v228 = vadd.f32 %v226, 1e-05
      %v229 = vadd.f32 %v227, 1e-05
      %v230 = vrsqrt.pop %v228
      %v231 = vrsqrt.pop %v229
      %v232 = vmul.f32 %v216, %v230
      %v233 = vmul.f32 %v217, %v231
      %v234 = vld [vmem:[%s2] sm:$0x1]
      %v236 = vlaneseq
      %v237 = vshrl.u32 %v236, 7
      %v238 = vsub.s32 0, %v237
      %v239 = vrot.slane %v234, %v238
      %v241 = vmul.f32 %v232, %v239
      %v242 = vmul.f32 %v233, %v239
      %v243 = vld [vmem:[%s3] sm:$0x1]
      %v245 = vlaneseq
      %v246 = vshrl.u32 %v245, 7
      %v247 = vsub.s32 0, %v246
      %v248 = vrot.slane %v243, %v247
      %v250 = vadd.f32 %v241, %v248
      %v251 = vadd.f32 %v242, %v248
      %v252 = vpack.c.bf16 %v251, %v250
      %v254 = vunpack.c.l.b16 %v252
      %v255 = vunpack.c.h.b16 %v252
      %v256 = vpack.c.b16 %v254, %v254
      %v257 = vpack.c.b16 %v255, %v255
      %vm260 = vcmask 257024
      %261 = vst.msk [vmem:[%s197] sm:$0xf] %vm260, %v256
      %262 = vst.msk [vmem:[%s197 + $0x4] sm:$0xf] %vm260, %v257
      %p263 = scmp.lt.s32.totalorder %s15, 1
      %s264 = scalar_select %p263, %s15, 1
      %s265 = smul.addr %s264, 2
      %s266 = smul.addr %s265, 4
      %s267 = scalar_lea.vmem %s4, %s266
      // Predicated region
      $region37: #{image_clip_forward.14} parent=35 // pred_check
        %p268 = pneg %p122
      $region38: #{image_clip_forward.14} parent=35 // pred_check_branch
        %270 = sbr.rel (%p268) target = $region40
      $region39: #{image_clip_forward.14} parent=35 // pred_region
        _
      $region40: #{image_clip_forward.14} parent=35 // pred_fallthru
        _
    $region36: #{image_clip_forward.14} parent=5 // pred_fallthru
      _
    %p271 = scmp.le.s32.totalorder 2, %s10
    // Predicated region
    $region41: #{image_clip_forward.14} parent=5 // pred_check
      %p272 = pneg %p271
    $region42: #{image_clip_forward.14} parent=5 // pred_check_branch
      %274 = sbr.rel (%p272) target = $region44
    $region43: #{image_clip_forward.14} parent=5 // pred_region
      %s275 = ssub.s32 %s10, 2
      // Predicated region
      $region45: #{image_clip_forward.14} parent=43 // pred_check
        %p276 = pneg %p128
      $region46: #{image_clip_forward.14} parent=43 // pred_check_branch
        %278 = sbr.rel (%p276) target = $region48
      $region47: #{image_clip_forward.14} parent=43 // pred_region
        %p279 = scmp.lt.s32.totalorder %s16, 1
        %s280 = scalar_select %p279, %s16, 1
        %s281 = smul.addr %s280, 2
        %s282 = smul.addr %s281, 4
        %s283 = scalar_lea.vmem %s4, %s282
      $region48: #{image_clip_forward.14} parent=43 // pred_fallthru
        _
    $region44: #{image_clip_forward.14} parent=5 // pred_fallthru
      _
  $region6: #{image_clip_forward.14} parent=0 // loop_footer
    %s14 = sadd.s32 1, %s10
  $region7: #{image_clip_forward.14} parent=0 // loop_footer_branch
    %9 = sbr.rel target = $region3
  $region8: #{image_clip_forward.14} parent=0 // loop_exit
    _

// kernel: image_clip_forward.13
$region0: #{image_clip_forward.13}
  #allocation0 [shape = 'u32[]', space=smem, size = 0x4, offset = 0x4, fixed_abs, tag = 'smem constant byte address 0x4 - core index']
  #allocation1 [shape = 'u32[144,128]{1,0:T(1,128)}', space=vmem, size = 0x12000, scoped, tag = 'internal scratch']
  %s0 = inlined_call_operand.vmem [shape: bf16[8,192], index: 0, kind: input, shape index: {}]
  %s1 = inlined_call_operand.vmem [shape: bf16[192,32], index: 1, kind: input, shape index: {}]
  %s2 = inlined_call_operand.vmem [shape: bf16[8,32], index: 2, kind: output, shape index: {}]
  %s3 = sld [smem:[#allocation0]]
  $region18: #{image_clip_forward.13} parent=0
    _
  %s5 = ssub.s32 1, %s3
  %s6 = scalar_select 0, %s5, %s3
  // Predicated region
  $region2: #{image_clip_forward.13} parent=0 // pred_check
    _
  $region3: #{image_clip_forward.13} parent=0 // pred_check_branch
    %8 = sbr.rel (0) target = $region5
  $region4: #{image_clip_forward.13} parent=0 // pred_region
    _
  $region5: #{image_clip_forward.13} parent=0 // pred_fallthru
    _
  // Predicated region
  $region6: #{image_clip_forward.13} parent=0 // pred_check
    _
  $region7: #{image_clip_forward.13} parent=0 // pred_check_branch
    %10 = sbr.rel (0) target = $region9
  $region8: #{image_clip_forward.13} parent=0 // pred_region
    _
  $region9: #{image_clip_forward.13} parent=0 // pred_fallthru
    _
  %v12 = vld [vmem:[%s0] sm:$0xff]
  %v13 = vld [vmem:[%s1] sm:$0xf]
  %v14 = vld [vmem:[%s1 + $0x4] sm:$0xf]
  %v15 = vld [vmem:[%s1 + $0x8] sm:$0xf]
  %v16 = vld [vmem:[%s1 + $0xc] sm:$0xf]
  %v17 = vld [vmem:[%s1 + $0x10] sm:$0xf]
  %v18 = vld [vmem:[%s1 + $0x14] sm:$0xf]
  %v19 = vld [vmem:[%s1 + $0x18] sm:$0xf]
  %v20 = vld [vmem:[%s1 + $0x1c] sm:$0xf]
  %v21 = vld [vmem:[%s1 + $0x20] sm:$0xf]
  %v22 = vld [vmem:[%s1 + $0x24] sm:$0xf]
  %v23 = vld [vmem:[%s1 + $0x28] sm:$0xf]
  %v24 = vld [vmem:[%s1 + $0x2c] sm:$0xf]
  %v25 = vld [vmem:[%s1 + $0x30] sm:$0xf]
  %v26 = vld [vmem:[%s1 + $0x34] sm:$0xf]
  %v27 = vld [vmem:[%s1 + $0x38] sm:$0xf]
  %v28 = vld [vmem:[%s1 + $0x3c] sm:$0xf]
  %v29 = vld [vmem:[%s1 + $0x40] sm:$0xf]
  %v30 = vld [vmem:[%s1 + $0x44] sm:$0xf]
  %v31 = vld [vmem:[%s1 + $0x48] sm:$0xf]
  %v32 = vld [vmem:[%s1 + $0x4c] sm:$0xf]
  %v33 = vld [vmem:[%s1 + $0x50] sm:$0xf]
  %v34 = vld [vmem:[%s1 + $0x54] sm:$0xf]
  %v35 = vld [vmem:[%s1 + $0x58] sm:$0xf]
  %v36 = vld [vmem:[%s1 + $0x5c] sm:$0xf]
  %v38 = vunpack.c.l.b16 %v12
  %v39 = vunpack.c.h.b16 %v12
  %v40 = vpack.c.b16 %v38, %v38
  %v41 = vpack.c.b16 %v39, %v39
  %v67 = vunpack.c.l.b16 %v13
  %v68 = vunpack.c.l.b16 %v14
  %v69 = vunpack.c.l.b16 %v15
  %v70 = vunpack.c.l.b16 %v16
  %v71 = vunpack.c.l.b16 %v17
  %v72 = vunpack.c.l.b16 %v18
  %v73 = vunpack.c.l.b16 %v19
  %v74 = vunpack.c.l.b16 %v20
  %v75 = vunpack.c.l.b16 %v21
  %v76 = vunpack.c.l.b16 %v22
  %v77 = vunpack.c.l.b16 %v23
  %v78 = vunpack.c.l.b16 %v24
  %v79 = vunpack.c.l.b16 %v25
  %v80 = vunpack.c.l.b16 %v26
  %v81 = vunpack.c.l.b16 %v27
  %v82 = vunpack.c.l.b16 %v28
  %v83 = vunpack.c.l.b16 %v29
  %v84 = vunpack.c.l.b16 %v30
  %v85 = vunpack.c.l.b16 %v31
  %v86 = vunpack.c.l.b16 %v32
  %v87 = vunpack.c.l.b16 %v33
  %v88 = vunpack.c.l.b16 %v34
  %v89 = vunpack.c.l.b16 %v35
  %v90 = vunpack.c.l.b16 %v36
  %v91 = vpack.c.b16 %v68, %v67
  %v92 = vpack.c.b16 %v70, %v69
  %v93 = vpack.c.b16 %v72, %v71
  %v94 = vpack.c.b16 %v74, %v73
  %v95 = vpack.c.b16 %v76, %v75
  %v96 = vpack.c.b16 %v78, %v77
  %v97 = vpack.c.b16 %v80, %v79
  %v98 = vpack.c.b16 %v82, %v81
  %v99 = vpack.c.b16 %v84, %v83
  %v100 = vpack.c.b16 %v86, %v85
  %v101 = vpack.c.b16 %v88, %v87
  %v102 = vpack.c.b16 %v90, %v89
  %vm115 = vcmask 523264
  %v117 = vsel %vm115, %v41, 0
  %119 = vmatprep.subr.bf16.mxu0 0
  %120 = vmatpush1.bf16.msra.mxu0 %v98
  %121 = vmatprep.subr.bf16.mxu0 0
  %122 = vmatpush1.bf16.msra.mxu0 %v97
  %123 = vmatprep.subr.bf16.mxu0 0
  %124 = vmatpush1.bf16.msra.mxu0 %v96
  %125 = vmatprep.subr.bf16.mxu0 0
  %126 = vmatpush1.bf16.msra.mxu0 %v95
  %127 = vmatprep.subr.bf16.mxu0 0
  %128 = vmatpush1.bf16.msra.mxu0 %v94
  %129 = vmatprep.subr.bf16.mxu0 0
  %130 = vmatpush1.bf16.msra.mxu0 %v93
  %131 = vmatprep.subr.bf16.mxu0 0
  %132 = vmatpush1.bf16.msra.mxu0 %v92
  %133 = vmatprep.subr.bf16.mxu0 0
  %134 = vmatpush1.bf16.msra.mxu0 %v91
  %135 = vmatprep.subr.bf16.mxu0 0
  %136 = vmatpush2.bf16.msra.mxu0 0
  %137 = vmatprep.subr.bf16.mxu0 0
  %138 = vmatpush2.bf16.msra.mxu0 0
  %139 = vmatprep.subr.bf16.mxu0 0
  %140 = vmatpush2.bf16.msra.mxu0 0
  %141 = vmatprep.subr.bf16.mxu0 0
  %142 = vmatpush2.bf16.msra.mxu0 0
  %143 = vmatprep.subr.bf16.mxu0 0
  %144 = vmatpush2.bf16.msra.mxu0 %v102
  %145 = vmatprep.subr.bf16.mxu0 0
  %146 = vmatpush2.bf16.msra.mxu0 %v101
  %147 = vmatprep.subr.bf16.mxu0 0
  %148 = vmatpush2.bf16.msra.mxu0 %v100
  %149 = vmatprep.subr.bf16.mxu0 0
  %150 = vmatpush2.bf16.msra.mxu0 %v99
  %151 = vmatprep.mubr.bf16.mxu0 %v117
  %152 = vmatmul.mubr.bf16.gmra.mxu0 %v40
  %v153 = vpop.f32.mrf.mxu0
  %v154 = vadd.f32 0.0, %v153
  %v155 = vpop.f32.mrf.mxu0
  %v156 = vpop.f32.mrf.mxu0
  %v157 = vpop.f32.mrf.mxu0
  %158 = vdwg.mxu0
  %v159 = vpack.c.bf16 %v154, %v154
  %vm160 = vcmask 257024
  %161 = vst.msk [vmem:[%s2] sm:$0xf] %vm160, %v159
  // Predicated region
  $region10: #{image_clip_forward.13} parent=0 // pred_check
    _
  $region11: #{image_clip_forward.13} parent=0 // pred_check_branch
    %163 = sbr.rel (0) target = $region13
  $region12: #{image_clip_forward.13} parent=0 // pred_region
    _
  $region13: #{image_clip_forward.13} parent=0 // pred_fallthru
    _
  // Predicated region
  $region14: #{image_clip_forward.13} parent=0 // pred_check
    _
  $region15: #{image_clip_forward.13} parent=0 // pred_check_branch
    %165 = sbr.rel (0) target = $region17
  $region16: #{image_clip_forward.13} parent=0 // pred_region
    _
  $region17: #{image_clip_forward.13} parent=0 // pred_fallthru
    _

// kernel: image_clip_forward.15
$region0: #{image_clip_forward.15}
  #allocation0 [shape = 'u32[]', space=smem, size = 0x4, offset = 0x4, fixed_abs, tag = 'smem constant byte address 0x4 - core index']
  #allocation1 [shape = 'u32[144,128]{1,0:T(1,128)}', space=vmem, size = 0x12000, scoped, tag = 'internal scratch']
  %s0 = inlined_call_operand.vmem [shape: bf16[32,32], index: 0, kind: input, shape index: {}]
  %s1 = inlined_call_operand.vmem [shape: bf16[32,96], index: 1, kind: input, shape index: {}]
  %s2 = inlined_call_operand.vmem [shape: f32[1,32], index: 2, kind: input, shape index: {}]
  %s3 = inlined_call_operand.vmem [shape: f32[1,32], index: 3, kind: input, shape index: {}]
  %s4 = inlined_call_operand.vmem [shape: f32[1,96], index: 4, kind: input, shape index: {}]
  %s5 = inlined_call_operand.vmem [shape: bf16[32,96], index: 5, kind: output, shape index: {}]
  %s6 = sld [smem:[#allocation0]]
  $region30: #{image_clip_forward.15} parent=0
    _
  %s8 = ssub.s32 1, %s6
  %s9 = scalar_select 0, %s8, %s6
  // Predicated region
  $region2: #{image_clip_forward.15} parent=0 // pred_check
    _
  $region3: #{image_clip_forward.15} parent=0 // pred_check_branch
    %11 = sbr.rel (0) target = $region5
  $region4: #{image_clip_forward.15} parent=0 // pred_region
    _
  $region5: #{image_clip_forward.15} parent=0 // pred_fallthru
    _
  // Predicated region
  $region6: #{image_clip_forward.15} parent=0 // pred_check
    _
  $region7: #{image_clip_forward.15} parent=0 // pred_check_branch
    %13 = sbr.rel (0) target = $region9
  $region8: #{image_clip_forward.15} parent=0 // pred_region
    _
  $region9: #{image_clip_forward.15} parent=0 // pred_fallthru
    _
  // Predicated region
  $region10: #{image_clip_forward.15} parent=0 // pred_check
    _
  $region11: #{image_clip_forward.15} parent=0 // pred_check_branch
    %15 = sbr.rel (0) target = $region13
  $region12: #{image_clip_forward.15} parent=0 // pred_region
    _
  $region13: #{image_clip_forward.15} parent=0 // pred_fallthru
    _
  // Predicated region
  $region14: #{image_clip_forward.15} parent=0 // pred_check
    _
  $region15: #{image_clip_forward.15} parent=0 // pred_check_branch
    %17 = sbr.rel (0) target = $region17
  $region16: #{image_clip_forward.15} parent=0 // pred_region
    _
  $region17: #{image_clip_forward.15} parent=0 // pred_fallthru
    _
  // Predicated region
  $region18: #{image_clip_forward.15} parent=0 // pred_check
    _
  $region19: #{image_clip_forward.15} parent=0 // pred_check_branch
    %19 = sbr.rel (0) target = $region21
  $region20: #{image_clip_forward.15} parent=0 // pred_region
    _
  $region21: #{image_clip_forward.15} parent=0 // pred_fallthru
    _
  %v21 = vld [vmem:[%s0] sm:$0xf]
  %v22 = vld [vmem:[%s0 + $0x4] sm:$0xf]
  %v23 = vld [vmem:[%s0 + $0x8] sm:$0xf]
  %v24 = vld [vmem:[%s0 + $0xc] sm:$0xf]
  %v25 = vunpack.c.l.bf16 %v21
  %v26 = vunpack.c.l.bf16 %v22
  %v27 = vunpack.c.l.bf16 %v23
  %v28 = vunpack.c.l.bf16 %v24
  %vm29 = vcmask 261120
  %v30 = vsel %vm29, %v25, 0.0
  %31 = vadd.xlane.f32.xlu0 %v30
  %v32 = vpop.xlane.xlu0 %31
  %v33 = vsel %vm29, %v26, 0.0
  %34 = vadd.xlane.f32.xlu0 %v33
  %v35 = vpop.xlane.xlu0 %34
  %v36 = vsel %vm29, %v27, 0.0
  %37 = vadd.xlane.f32.xlu0 %v36
  %v38 = vpop.xlane.xlu0 %37
  %v39 = vsel %vm29, %v28, 0.0
  %40 = vadd.xlane.f32.xlu0 %v39
  %v41 = vpop.xlane.xlu0 %40
  %v42 = vrcp.pop 32.0
  %v43 = vmul.f32 %v32, %v42
  %v44 = vmul.f32 %v35, %v42
  %v45 = vmul.f32 %v38, %v42
  %v46 = vmul.f32 %v41, %v42
  %v47 = vsub.f32 %v25, %v43
  %v48 = vsub.f32 %v26, %v44
  %v49 = vsub.f32 %v27, %v45
  %v50 = vsub.f32 %v28, %v46
  %v51 = vmul.f32 %v47, %v47
  %v52 = vmul.f32 %v48, %v48
  %v53 = vmul.f32 %v49, %v49
  %v54 = vmul.f32 %v50, %v50
  %v55 = vsel %vm29, %v51, 0.0
  %56 = vadd.xlane.f32.xlu0 %v55
  %v57 = vpop.xlane.xlu0 %56
  %v58 = vsel %vm29, %v52, 0.0
  %59 = vadd.xlane.f32.xlu0 %v58
  %v60 = vpop.xlane.xlu0 %59
  %v61 = vsel %vm29, %v53, 0.0
  %62 = vadd.xlane.f32.xlu0 %v61
  %v63 = vpop.xlane.xlu0 %62
  %v64 = vsel %vm29, %v54, 0.0
  %65 = vadd.xlane.f32.xlu0 %v64
  %v66 = vpop.xlane.xlu0 %65
  %v67 = vmul.f32 %v57, %v42
  %v68 = vmul.f32 %v60, %v42
  %v69 = vmul.f32 %v63, %v42
  %v70 = vmul.f32 %v66, %v42
  %v71 = vadd.f32 %v67, 1e-05
  %v72 = vadd.f32 %v68, 1e-05
  %v73 = vadd.f32 %v69, 1e-05
  %v74 = vadd.f32 %v70, 1e-05
  %v75 = vrsqrt.pop %v71
  %v76 = vrsqrt.pop %v72
  %v77 = vrsqrt.pop %v73
  %v78 = vrsqrt.pop %v74
  %v79 = vmul.f32 %v47, %v75
  %v80 = vmul.f32 %v48, %v76
  %v81 = vmul.f32 %v49, %v77
  %v82 = vmul.f32 %v50, %v78
  %v83 = vld [vmem:[%s2] sm:$0x1]
  %v85 = vlaneseq
  %v86 = vshrl.u32 %v85, 7
  %v87 = vsub.s32 0, %v86
  %v88 = vrot.slane %v83, %v87
  %v90 = vmul.f32 %v79, %v88
  %v91 = vmul.f32 %v80, %v88
  %v92 = vmul.f32 %v81, %v88
  %v93 = vmul.f32 %v82, %v88
  %v94 = vld [vmem:[%s3] sm:$0x1]
  %v96 = vlaneseq
  %v97 = vshrl.u32 %v96, 7
  %v98 = vsub.s32 0, %v97
  %v99 = vrot.slane %v94, %v98
  %v101 = vadd.f32 %v90, %v99
  %v102 = vadd.f32 %v91, %v99
  %v103 = vadd.f32 %v92, %v99
  %v104 = vadd.f32 %v93, %v99
  %v105 = vpack.c.bf16 %v102, %v101
  %v106 = vpack.c.bf16 %v104, %v103
  %v107 = vld [vmem:[%s1] sm:$0xf]
  %v108 = vld [vmem:[%s1 + $0x4] sm:$0xf]
  %v109 = vld [vmem:[%s1 + $0x8] sm:$0xf]
  %v110 = vld [vmem:[%s1 + $0xc] sm:$0xf]
  %v111 = vld [vmem:[%s4] sm:$0x1]
  %v113 = vlaneseq
  %v114 = vshrl.u32 %v113, 7
  %v115 = vsub.s32 0, %v114
  %v116 = vrot.slane %v111, %v115
  %v122 = vunpack.c.l.b16 %v107
  %v123 = vunpack.c.l.b16 %v108
  %v124 = vunpack.c.l.b16 %v109
  %v125 = vunpack.c.l.b16 %v110
  %v126 = vpack.c.b16 %v123, %v122
  %v127 = vpack.c.b16 %v125, %v124
  %v131 = vsel %vm29, %v105, 0
  %v134 = vsel %vm29, %v106, 0
  %136 = vmatprep.subr.bf16.mxu0 0
  %137 = vmatpush1.bf16.msra.mxu0 0
  %138 = vmatprep.subr.bf16.mxu0 0
  %139 = vmatpush1.bf16.msra.mxu0 0
  %140 = vmatprep.subr.bf16.mxu0 0
  %141 = vmatpush1.bf16.msra.mxu0 0
  %142 = vmatprep.subr.bf16.mxu0 0
  %143 = vmatpush1.bf16.msra.mxu0 0
  %144 = vmatprep.subr.bf16.mxu0 0
  %145 = vmatpush1.bf16.msra.mxu0 0
  %146 = vmatprep.subr.bf16.mxu0 0
  %147 = vmatpush1.bf16.msra.mxu0 0
  %148 = vmatprep.subr.bf16.mxu0 0
  %149 = vmatpush1.bf16.msra.mxu0 %v127
  %150 = vmatprep.subr.bf16.mxu0 0
  %151 = vmatpush1.bf16.msra.mxu0 %v126
  %152 = vmatprep.subr.bf16.mxu0 0
  %153 = vmatpush2.bf16.msra.mxu0 0
  %154 = vmatprep.subr.bf16.mxu0 0
  %155 = vmatpush2.bf16.msra.mxu0 0
  %156 = vmatprep.subr.bf16.mxu0 0
  %157 = vmatpush2.bf16.msra.mxu0 0
  %158 = vmatprep.subr.bf16.mxu0 0
  %159 = vmatpush2.bf16.msra.mxu0 0
  %160 = vmatprep.subr.bf16.mxu0 0
  %161 = vmatpush2.bf16.msra.mxu0 0
  %162 = vmatprep.subr.bf16.mxu0 0
  %163 = vmatpush2.bf16.msra.mxu0 0
  %164 = vmatprep.subr.bf16.mxu0 0
  %165 = vmatpush2.bf16.msra.mxu0 0
  %166 = vmatprep.subr.bf16.mxu0 0
  %167 = vmatpush2.bf16.msra.mxu0 0
  %168 = vmatprep.mubr.bf16.mxu0 0
  %169 = vmatmul.mubr.bf16.gmra.mxu0 %v131
  %v170 = vpop.f32.mrf.mxu0
  %v171 = vadd.f32 %v116, %v170
  %v172 = vpop.f32.mrf.mxu0
  %v173 = vpop.f32.mrf.mxu0
  %v174 = vadd.f32 %v116, %v173
  %v175 = vpop.f32.mrf.mxu0
  %176 = vmatprep.mubr.bf16.mxu0 0
  %177 = vmatmul.mubr.bf16.gmra.mxu0 %v134
  %v178 = vpop.f32.mrf.mxu0
  %v179 = vadd.f32 %v116, %v178
  %v180 = vpop.f32.mrf.mxu0
  %v181 = vpop.f32.mrf.mxu0
  %v182 = vadd.f32 %v116, %v181
  %v183 = vpop.f32.mrf.mxu0
  %184 = vdwg.mxu0
  %v185 = vpack.c.bf16 %v174, %v171
  %v186 = vpack.c.bf16 %v182, %v179
  %v189 = vunpack.c.l.b16 %v185
  %v190 = vunpack.c.h.b16 %v185
  %v191 = vunpack.c.l.b16 %v186
  %v192 = vunpack.c.h.b16 %v186
  %v193 = vpack.c.b16 %v189, %v189
  %v194 = vpack.c.b16 %v190, %v190
  %v195 = vpack.c.b16 %v191, %v191
  %v196 = vpack.c.b16 %v192, %v192
  %vm201 = vcmask 781312
  %202 = vst.msk [vmem:[%s5] sm:$0xf] %vm201, %v193
  %203 = vst.msk [vmem:[%s5 + $0x4] sm:$0xf] %vm201, %v194
  %204 = vst.msk [vmem:[%s5 + $0x8] sm:$0xf] %vm201, %v195
  %205 = vst.msk [vmem:[%s5 + $0xc] sm:$0xf] %vm201, %v196
  // Predicated region
  $region22: #{image_clip_forward.15} parent=0 // pred_check
    _
  $region23: #{image_clip_forward.15} parent=0 // pred_check_branch
    %207 = sbr.rel (0) target = $region25
  $region24: #{image_clip_forward.15} parent=0 // pred_region
    _
  $region25: #{image_clip_forward.15} parent=0 // pred_fallthru
    _
  // Predicated region
  $region26: #{image_clip_forward.15} parent=0 // pred_check
    _
  $region27: #{image_clip_forward.15} parent=0 // pred_check_branch
    %209 = sbr.rel (0) target = $region29
  $region28: #{image_clip_forward.15} parent=0 // pred_region
    _
  $region29: #{image_clip_forward.15} parent=0 // pred_fallthru
    _

// kernel: image_clip_forward.16
$region0: #{image_clip_forward.16}
  #allocation0 [shape = 'u32[]', space=smem, size = 0x4, offset = 0x4, fixed_abs, tag = 'smem constant byte address 0x4 - core index']
  #allocation1 [shape = 'u32[144,128]{1,0:T(1,128)}', space=vmem, size = 0x12000, scoped, tag = 'internal scratch']
  %s0 = inlined_call_operand.vmem [shape: bf16[2,16,96], index: 0, kind: input, shape index: {}]
  %s1 = inlined_call_operand.vmem [shape: bf16[2,16,32], index: 1, kind: output, shape index: {}]
  %s2 = sld [smem:[#allocation0]]
  $region37: #{image_clip_forward.16} parent=0
    _
  %s4 = ssub.s32 1, %s2
  %s5 = scalar_select 0, %s4, %s2
  loop: start=0, step=1, limit=4
  $region2: #{image_clip_forward.16} parent=0 // loop_pre_header
    _
  $region3: #{image_clip_forward.16} parent=0 // loop_header
    %s7 = sphi 0, %s11
    %p8 = scmp.ge.s32.totalorder %s7, 4
    %s14 = sphi 0, %s26
    %s15 = sphi 0, %s22
    %s16 = sphi 0, %s14
    %s17 = sphi 0, %s15
    %s18 = sphi 0, %s16
    %s19 = sphi 0, %s17
    %s29 = sphi 0, %s31
    %s32 = sphi 0, %s29
    %s33 = sphi 0, %s32
    %s49 = sphi 0, %s33
    %s57 = sphi 0, %s59
    %s60 = sphi 0, %s57
    %s61 = sphi 0, %s60
    %s77 = sphi 0, %s61
  $region4: #{image_clip_forward.16} parent=0 // loop_header_branch
    %10 = sbr.rel (%p8) target = $region8
  $region5: #{image_clip_forward.16} parent=0 // loop_body
    %s12 = ssub.s32 %s7, 1
    %s13 = ssub.s32 %s7, 2
    %s20 = sadd.s32 1, %s15
    %p21 = scmp.ge.s32.totalorder %s20, 1
    %s22 = scalar_select %p21, 0, %s20
    %s23 = sadd.s32 1, %s14
    %s24 = scalar_select %p21, %s23, %s14
    %p25 = scmp.ge.s32.totalorder %s24, 2
    %s26 = scalar_select %p25, 0, %s24
    %s27 = ssub.s32 %s14, %s26
    %p28 = scmp.eq.s32.totalorder %s27, 0
    %s30 = sadd.s32 %s29, 1
    %s31 = scalar_select %p28, %s29, %s30
    %p34 = pneg %p28
    %p35 = scmp.eq.s32.totalorder %s7, 1
    %p36 = por %p34, %p35
    %p37 = scmp.ne.s32.totalorder %s29, %s32
    %p38 = scmp.eq.s32.totalorder %s7, 0
    %p39 = por %p37, %p38
    %p40 = scmp.ne.s32.totalorder %s29, %s32
    %p41 = scmp.eq.s32.totalorder %s12, 1
    %p42 = por %p40, %p41
    %p43 = scmp.ne.s32.totalorder %s32, %s33
    %p44 = scmp.eq.s32.totalorder %s12, 0
    %p45 = por %p43, %p44
    %p46 = scmp.ne.s32.totalorder %s32, %s33
    %p47 = scmp.eq.s32.totalorder %s13, 1
    %p48 = por %p46, %p47
    %p50 = scmp.ne.s32.totalorder %s33, %s49
    %p51 = scmp.eq.s32.totalorder %s13, 0
    %p52 = por %p50, %p51
    %s53 = ssub.s32 %s14, %s26
    %s54 = ssub.s32 %s15, %s22
    %s55 = sor.u32 %s53, %s54
    %p56 = scmp.eq.s32.totalorder %s55, 0
    %s58 = sadd.s32 %s57, 1
    %s59 = scalar_select %p56, %s57, %s58
    %p62 = pneg %p56
    %p63 = scmp.eq.s32.totalorder %s7, 1
    %p64 = por %p62, %p63
    %p65 = scmp.ne.s32.totalorder %s57, %s60
    %p66 = scmp.eq.s32.totalorder %s7, 0
    %p67 = por %p65, %p66
    %p68 = scmp.ne.s32.totalorder %s57, %s60
    %p69 = scmp.eq.s32.totalorder %s12, 1
    %p70 = por %p68, %p69
    %p71 = scmp.ne.s32.totalorder %s60, %s61
    %p72 = scmp.eq.s32.totalorder %s12, 0
    %p73 = por %p71, %p72
    %p74 = scmp.ne.s32.totalorder %s60, %s61
    %p75 = scmp.eq.s32.totalorder %s13, 1
    %p76 = por %p74, %p75
    %p78 = scmp.ne.s32.totalorder %s61, %s77
    %p79 = scmp.eq.s32.totalorder %s13, 0
    %p80 = por %p78, %p79
    %p81 = scmp.le.s32.totalorder 1, %s7
    %p82 = scmp.lt.s32.totalorder %s7, 3
    %p83 = pnand %p81, %p82
    %p84 = pneg %p83
    // Predicated region
    $region9: #{image_clip_forward.16} parent=5 // pred_check
      _
    $region10: #{image_clip_forward.16} parent=5 // pred_check_branch
      %86 = sbr.rel (%p83) target = $region12
    $region11: #{image_clip_forward.16} parent=5 // pred_region
      %s87 = ssub.s32 %s7, 1
    $region12: #{image_clip_forward.16} parent=5 // pred_fallthru
      _
    %p88 = scmp.lt.s32.totalorder %s7, 2
    // Predicated region
    $region13: #{image_clip_forward.16} parent=5 // pred_check
      %p89 = pneg %p88
    $region14: #{image_clip_forward.16} parent=5 // pred_check_branch
      %91 = sbr.rel (%p89) target = $region16
    $region15: #{image_clip_forward.16} parent=5 // pred_region
      // Predicated region
      $region17: #{image_clip_forward.16} parent=15 // pred_check
        %p92 = pneg %p39
      $region18: #{image_clip_forward.16} parent=15 // pred_check_branch
        %94 = sbr.rel (%p92) target = $region20
      $region19: #{image_clip_forward.16} parent=15 // pred_region
        %p95 = scmp.lt.s32.totalorder %s14, 1
        %s96 = scalar_select %p95, %s14, 1
        %s97 = smul.addr %s96, 2
        %s98 = smul.addr %s97, 4
        %s99 = scalar_lea.vmem %s0, %s98
      $region20: #{image_clip_forward.16} parent=15 // pred_fallthru
        _
    $region16: #{image_clip_forward.16} parent=5 // pred_fallthru
      _
    %p100 = scmp.le.s32.totalorder 1, %s7
    %p101 = scmp.lt.s32.totalorder %s7, 3
    %p102 = pnand %p100, %p101
    %p103 = pneg %p102
    // Predicated region
    $region21: #{image_clip_forward.16} parent=5 // pred_check
      _
    $region22: #{image_clip_forward.16} parent=5 // pred_check_branch
      %105 = sbr.rel (%p102) target = $region24
    $region23: #{image_clip_forward.16} parent=5 // pred_region
      %s106 = ssub.s32 %s7, 1
      %p107 = scmp.lt.s32.totalorder %s16, 1
      %s108 = scalar_select %p107, %s16, 1
      %s109 = smul.addr %s108, 2
      %s110 = smul.addr %s109, 4
      %s111 = scalar_lea.vmem %s0, %s110
      %p112 = pneg %p45
      %p113 = pneg %p42
      %p114 = pneg %p73
      %p115 = pneg %p70
      %s116 = smul.u32 2, %s17
      %p117 = scmp.lt.s32.totalorder %s16, 1
      %s118 = scalar_select %p117, %s16, 1
      %p119 = scmp.lt.s32.totalorder %s116, 1
      %s120 = scalar_select %p119, %s116, 1
      %s121 = smul.addr %s118, 2
      %s122 = sadd.s32 %s120, %s121
      %s123 = smul.addr %s122, 4
      %s124 = scalar_lea.vmem %s1, %s123
      %p125 = scmp.lt.s32.totalorder %s16, 1
      %s126 = scalar_select %p125, %s16, 1
      %s127 = smul.addr %s126, 2
      %s128 = smul.addr %s127, 4
      %s129 = scalar_lea.vmem %s0, %s128
      %s130 = smul.u32 2, %s17
      %p131 = scmp.lt.s32.totalorder %s16, 1
      %s132 = scalar_select %p131, %s16, 1
      %p133 = scmp.lt.s32.totalorder %s130, 1
      %s134 = scalar_select %p133, %s130, 1
      %s135 = smul.addr %s132, 2
      %s136 = sadd.s32 %s134, %s135
      %s137 = smul.addr %s136, 4
      %s138 = scalar_lea.vmem %s1, %s137
      %s139 = smul.u32 2, %s17
      %s141 = smul.u32 %s17, 16
      %v142 = vlaneseq
      %v143 = vand.u32 %v142, 127
      %vm144 = vcmp.lt.s32.totalorder %v143, 5
      %s145 = sshra.s32 %s141, 3
      %s146 = sand.u32 %s141, 7
      %s147 = smul.addr %s145, 4
      %s148 = scalar_lea.vmem %s129, %s147
      %v149 = vld [vmem:[%s148] sm:$0xf]
      %v150 = vld [vmem:[%s148 + $0x4] sm:$0xf]
      %v151 = vld [vmem:[%s129] sm:$0xf]
      %v152 = vld [vmem:[%s129 + $0x4] sm:$0xf]
      %v153 = vunpack.c.l.bf16 %v149
      %v154 = vunpack.c.l.bf16 %v150
      %v155 = vmul.f32 %v153, 0.25
      %v156 = vmul.f32 %v154, 0.25
      %v157 = vpack.c.bf16 %v156, %v155
      %v160 = vunpack.c.l.b16 %v151
      %v161 = vunpack.c.l.b16 %v152
      %v162 = vpack.c.b16 %v161, %v160
      %163 = vrot.lane.b32.xlu0 %v162, 96
      %v164 = vpop.permute.xlu0 %163
      %vm165 = vcmask 130048
      %v167 = vsel %vm165, %v157, 0
      %v170 = vsel %vm165, %v164, 0
      %172 = vmatprep.subr.bf16.mxu0 0
      %173 = vmatpush1.bf16.xpose.msra.mxu0 0
      %174 = vmatprep.subr.bf16.mxu0 0
      %175 = vmatpush1.bf16.xpose.msra.mxu0 0
      %176 = vmatprep.subr.bf16.mxu0 0
      %177 = vmatpush1.bf16.xpose.msra.mxu0 0
      %178 = vmatprep.subr.bf16.mxu0 0
      %179 = vmatpush1.bf16.xpose.msra.mxu0 0
      %180 = vmatprep.subr.bf16.mxu0 0
      %181 = vmatpush1.bf16.xpose.msra.mxu0 0
      %182 = vmatprep.subr.bf16.mxu0 0
      %183 = vmatpush1.bf16.xpose.msra.mxu0 0
      %184 = vmatprep.subr.bf16.mxu0 0
      %185 = vmatpush1.bf16.xpose.msra.mxu0 0
      %186 = vmatprep.subr.bf16.mxu0 0
      %187 = vmatpush1.bf16.xpose.msra.mxu0 %v170
      %188 = vmatprep.subr.bf16.mxu0 0
      %189 = vmatpush2.bf16.xpose.msra.mxu0 0
      %190 = vmatprep.subr.bf16.mxu0 0
      %191 = vmatpush2.bf16.xpose.msra.mxu0 0
      %192 = vmatprep.subr.bf16.mxu0 0
      %193 = vmatpush2.bf16.xpose.msra.mxu0 0
      %194 = vmatprep.subr.bf16.mxu0 0
      %195 = vmatpush2.bf16.xpose.msra.mxu0 0
      %196 = vmatprep.subr.bf16.mxu0 0
      %197 = vmatpush2.bf16.xpose.msra.mxu0 0
      %198 = vmatprep.subr.bf16.mxu0 0
      %199 = vmatpush2.bf16.xpose.msra.mxu0 0
      %200 = vmatprep.subr.bf16.mxu0 0
      %201 = vmatpush2.bf16.xpose.msra.mxu0 0
      %202 = vmatprep.subr.bf16.mxu0 0
      %203 = vmatpush2.bf16.xpose.msra.mxu0 0
      %204 = vmatprep.mubr.bf16.mxu0 0
      %205 = vmatmul.mubr.bf16.gmra.mxu0 %v167
      %v206 = vpop.f32.mrf.mxu0
      %v207 = vadd.f32 0.0, %v206
      %v208 = vpop.f32.mrf.mxu0
      %v209 = vpop.f32.mrf.mxu0
      %v210 = vadd.f32 0.0, %v209
      %v211 = vpop.f32.mrf.mxu0
      %212 = vdwg.mxu0
      %v213 = vsel %vm144, %v207, -1e+30
      %v214 = vsel %vm144, %v210, -1e+30
      %v215 = vsel %vm165, %v213, -inf
      %216 = vmax.xlane.f32.xlu0 %v215
      %v217 = vpop.xlane.xlu0 %216
      %v218 = vsel %vm165, %v214, -inf
      %219 = vmax.xlane.f32.xlu0 %v218
      %v220 = vpop.xlane.xlu0 %219
      %v221 = vsub.f32 %v213, %v217
      %v222 = vsub.f32 %v214, %v220
      %v223 = vmul.f32 %v221, 1.442695
      %v224 = vpow.pop %v223
      %v225 = vmul.f32 %v222, 1.442695
      %v226 = vpow.pop %v225
      %v227 = vsel %vm165, %v224, 0.0
      %228 = vadd.xlane.f32.xlu0 %v227
      %v229 = vpop.xlane.xlu0 %228
      %v230 = vsel %vm165, %v226, 0.0
      %231 = vadd.xlane.f32.xlu0 %v230
      %v232 = vpop.xlane.xlu0 %231
      %v233 = vrcp.pop %v229
      %v234 = vrcp.pop %v232
      %v235 = vmul.f32 %v224, %v233
      %v236 = vmul.f32 %v226, %v234
      %v237 = vpack.c.bf16 %v236, %v235
      %238 = vrot.lane.b32.xlu0 %v162, 64
      %v239 = vpop.permute.xlu0 %238
      %v242 = vsel %vm165, %v237, 0
      %244 = vmatprep.subr.bf16.mxu0 0
      %245 = vmatpush1.bf16.msra.mxu0 0
      %246 = vmatprep.subr.bf16.mxu0 0
      %247 = vmatpush1.bf16.msra.mxu0 0
      %248 = vmatprep.subr.bf16.mxu0 0
      %249 = vmatpush1.bf16.msra.mxu0 0
      %250 = vmatprep.subr.bf16.mxu0 0
      %251 = vmatpush1.bf16.msra.mxu0 0
      %252 = vmatprep.subr.bf16.mxu0 0
      %253 = vmatpush1.bf16.msra.mxu0 0
      %254 = vmatprep.subr.bf16.mxu0 0
      %255 = vmatpush1.bf16.msra.mxu0 0
      %256 = vmatprep.subr.bf16.mxu0 0
      %257 = vmatpush1.bf16.msra.mxu0 0
      %258 = vmatprep.subr.bf16.mxu0 0
      %259 = vmatpush1.bf16.msra.mxu0 %v239
      %260 = vmatprep.subr.bf16.mxu0 0
      %261 = vmatpush2.bf16.msra.mxu0 0
      %262 = vmatprep.subr.bf16.mxu0 0
      %263 = vmatpush2.bf16.msra.mxu0 0
      %264 = vmatprep.subr.bf16.mxu0 0
      %265 = vmatpush2.bf16.msra.mxu0 0
      %266 = vmatprep.subr.bf16.mxu0 0
      %267 = vmatpush2.bf16.msra.mxu0 0
      %268 = vmatprep.subr.bf16.mxu0 0
      %269 = vmatpush2.bf16.msra.mxu0 0
      %270 = vmatprep.subr.bf16.mxu0 0
      %271 = vmatpush2.bf16.msra.mxu0 0
      %272 = vmatprep.subr.bf16.mxu0 0
      %273 = vmatpush2.bf16.msra.mxu0 0
      %274 = vmatprep.subr.bf16.mxu0 0
      %275 = vmatpush2.bf16.msra.mxu0 0
      %276 = vmatprep.mubr.bf16.mxu0 0
      %277 = vmatmul.mubr.bf16.gmra.mxu0 %v242
      %v278 = vpop.f32.mrf.mxu0
      %v279 = vadd.f32 0.0, %v278
      %v280 = vpop.f32.mrf.mxu0
      %v281 = vpop.f32.mrf.mxu0
      %v282 = vadd.f32 0.0, %v281
      %v283 = vpop.f32.mrf.mxu0
      %284 = vdwg.mxu0
      %286 = vrot.lane.b32.xlu0 %v157, 112
      %v287 = vpop.permute.xlu0 %286
      %288 = vrot.lane.b32.xlu0 %v162, 80
      %v289 = vpop.permute.xlu0 %288
      %v291 = vsel %vm165, %v287, 0
      %v294 = vsel %vm165, %v289, 0
      %296 = vmatprep.subr.bf16.mxu0 0
      %297 = vmatpush1.bf16.xpose.msra.mxu0 0
      %298 = vmatprep.subr.bf16.mxu0 0
      %299 = vmatpush1.bf16.xpose.msra.mxu0 0
      %300 = vmatprep.subr.bf16.mxu0 0
      %301 = vmatpush1.bf16.xpose.msra.mxu0 0
      %302 = vmatprep.subr.bf16.mxu0 0
      %303 = vmatpush1.bf16.xpose.msra.mxu0 0
      %304 = vmatprep.subr.bf16.mxu0 0
      %305 = vmatpush1.bf16.xpose.msra.mxu0 0
      %306 = vmatprep.subr.bf16.mxu0 0
      %307 = vmatpush1.bf16.xpose.msra.mxu0 0
      %308 = vmatprep.subr.bf16.mxu0 0
      %309 = vmatpush1.bf16.xpose.msra.mxu0 0
      %310 = vmatprep.subr.bf16.mxu0 0
      %311 = vmatpush1.bf16.xpose.msra.mxu0 %v294
      %312 = vmatprep.subr.bf16.mxu0 0
      %313 = vmatpush2.bf16.xpose.msra.mxu0 0
      %314 = vmatprep.subr.bf16.mxu0 0
      %315 = vmatpush2.bf16.xpose.msra.mxu0 0
      %316 = vmatprep.subr.bf16.mxu0 0
      %317 = vmatpush2.bf16.xpose.msra.mxu0 0
      %318 = vmatprep.subr.bf16.mxu0 0
      %319 = vmatpush2.bf16.xpose.msra.mxu0 0
      %320 = vmatprep.subr.bf16.mxu0 0
      %321 = vmatpush2.bf16.xpose.msra.mxu0 0
      %322 = vmatprep.subr.bf16.mxu0 0
      %323 = vmatpush2.bf16.xpose.msra.mxu0 0
      %324 = vmatprep.subr.bf16.mxu0 0
      %325 = vmatpush2.bf16.xpose.msra.mxu0 0
      %326 = vmatprep.subr.bf16.mxu0 0
      %327 = vmatpush2.bf16.xpose.msra.mxu0 0
      %328 = vmatprep.mubr.bf16.mxu0 0
      %329 = vmatmul.mubr.bf16.gmra.mxu0 %v291
      %v330 = vpop.f32.mrf.mxu0
      %v331 = vadd.f32 0.0, %v330
      %v332 = vpop.f32.mrf.mxu0
      %v333 = vpop.f32.mrf.mxu0
      %v334 = vadd.f32 0.0, %v333
      %v335 = vpop.f32.mrf.mxu0
      %336 = vdwg.mxu0
      %v337 = vsel %vm144, %v331, -1e+30
      %v338 = vsel %vm144, %v334, -1e+30
      %v339 = vsel %vm165, %v337, -inf
      %340 = vmax.xlane.f32.xlu0 %v339
      %v341 = vpop.xlane.xlu0 %340
      %v342 = vsel %vm165, %v338, -inf
      %343 = vmax.xlane.f32.xlu0 %v342
      %v344 = vpop.xlane.xlu0 %343
      %v345 = vsub.f32 %v337, %v341
      %v346 = vsub.f32 %v338, %v344
      %v347 = vmul.f32 %v345, 1.442695
      %v348 = vpow.pop %v347
      %v349 = vmul.f32 %v346, 1.442695
      %v350 = vpow.pop %v349
      %v351 = vsel %vm165, %v348, 0.0
      %352 = vadd.xlane.f32.xlu0 %v351
      %v353 = vpop.xlane.xlu0 %352
      %v354 = vsel %vm165, %v350, 0.0
      %355 = vadd.xlane.f32.xlu0 %v354
      %v356 = vpop.xlane.xlu0 %355
      %v357 = vrcp.pop %v353
      %v358 = vrcp.pop %v356
      %v359 = vmul.f32 %v348, %v357
      %v360 = vmul.f32 %v350, %v358
      %v361 = vpack.c.bf16 %v360, %v359
      %362 = vrot.lane.b32.xlu0 %v162, 48
      %v363 = vpop.permute.xlu0 %362
      %v366 = vsel %vm165, %v361, 0
      %368 = vmatprep.subr.bf16.mxu0 0
      %369 = vmatpush1.bf16.msra.mxu0 0
      %370 = vmatprep.subr.bf16.mxu0 0
      %371 = vmatpush1.bf16.msra.mxu0 0
      %372 = vmatprep.subr.bf16.mxu0 0
      %373 = vmatpush1.bf16.msra.mxu0 0
      %374 = vmatprep.subr.bf16.mxu0 0
      %375 = vmatpush1.bf16.msra.mxu0 0
      %376 = vmatprep.subr.bf16.mxu0 0
      %377 = vmatpush1.bf16.msra.mxu0 0
      %378 = vmatprep.subr.bf16.mxu0 0
      %379 = vmatpush1.bf16.msra.mxu0 0
      %380 = vmatprep.subr.bf16.mxu0 0
      %381 = vmatpush1.bf16.msra.mxu0 0
      %382 = vmatprep.subr.bf16.mxu0 0
      %383 = vmatpush1.bf16.msra.mxu0 %v363
      %384 = vmatprep.subr.bf16.mxu0 0
      %385 = vmatpush2.bf16.msra.mxu0 0
      %386 = vmatprep.subr.bf16.mxu0 0
      %387 = vmatpush2.bf16.msra.mxu0 0
      %388 = vmatprep.subr.bf16.mxu0 0
      %389 = vmatpush2.bf16.msra.mxu0 0
      %390 = vmatprep.subr.bf16.mxu0 0
      %391 = vmatpush2.bf16.msra.mxu0 0
      %392 = vmatprep.subr.bf16.mxu0 0
      %393 = vmatpush2.bf16.msra.mxu0 0
      %394 = vmatprep.subr.bf16.mxu0 0
      %395 = vmatpush2.bf16.msra.mxu0 0
      %396 = vmatprep.subr.bf16.mxu0 0
      %397 = vmatpush2.bf16.msra.mxu0 0
      %398 = vmatprep.subr.bf16.mxu0 0
      %399 = vmatpush2.bf16.msra.mxu0 0
      %400 = vmatprep.mubr.bf16.mxu0 0
      %401 = vmatmul.mubr.bf16.gmra.mxu0 %v366
      %v402 = vpop.f32.mrf.mxu0
      %v403 = vadd.f32 0.0, %v402
      %v404 = vpop.f32.mrf.mxu0
      %v405 = vpop.f32.mrf.mxu0
      %v406 = vadd.f32 0.0, %v405
      %v407 = vpop.f32.mrf.mxu0
      %408 = vdwg.mxu0
      %411 = vrot.lane.b32.xlu0 %v403, 16
      %v412 = vpop.permute.xlu0 %411
      %413 = vrot.lane.b32.xlu0 %v406, 16
      %v414 = vpop.permute.xlu0 %413
      %v417 = vsel %vm165, %v279, %v412
      %v418 = vsel %vm165, %v282, %v414
      %v419 = vpack.c.bf16 %v418, %v417
      %v421 = vunpack.c.l.b16 %v419
      %v422 = vunpack.c.h.b16 %v419
      %v423 = vpack.c.b16 %v421, %v421
      %v424 = vpack.c.b16 %v422, %v422
      %vm427 = vcmask 257024
      %428 = vst.msk [vmem:[%s138] sm:$0xf] %vm427, %v423
      %429 = vst.msk [vmem:[%s138 + $0x4] sm:$0xf] %vm427, %v424
      %s430 = smul.u32 2, %s17
      %p431 = scmp.lt.s32.totalorder %s16, 1
      %s432 = scalar_select %p431, %s16, 1
      %p433 = scmp.lt.s32.totalorder %s430, 1
      %s434 = scalar_select %p433, %s430, 1
      %s435 = smul.addr %s432, 2
      %s436 = sadd.s32 %s434, %s435
      %s437 = smul.addr %s436, 4
      %s438 = scalar_lea.vmem %s1, %s437
      // Predicated region
      $region25: #{image_clip_forward.16} parent=23 // pred_check
        %p439 = pneg %p70
      $region26: #{image_clip_forward.16} parent=23 // pred_check_branch
        %441 = sbr.rel (%p439) target = $region28
      $region27: #{image_clip_forward.16} parent=23 // pred_region
        %s442 = smul.u32 2, %s17
      $region28: #{image_clip_forward.16} parent=23 // pred_fallthru
        _
    $region24: #{image_clip_forward.16} parent=5 // pred_fallthru
      _
    %p443 = scmp.le.s32.totalorder 2, %s7
    // Predicated region
    $region29: #{image_clip_forward.16} parent=5 // pred_check
      %p444 = pneg %p443
    $region30: #{image_clip_forward.16} parent=5 // pred_check_branch
      %446 = sbr.rel (%p444) target = $region32
    $region31: #{image_clip_forward.16} parent=5 // pred_region
      %s447 = ssub.s32 %s7, 2
      // Predicated region
      $region33: #{image_clip_forward.16} parent=31 // pred_check
        %p448 = pneg %p76
      $region34: #{image_clip_forward.16} parent=31 // pred_check_branch
        %450 = sbr.rel (%p448) target = $region36
      $region35: #{image_clip_forward.16} parent=31 // pred_region
        %s451 = smul.u32 2, %s19
        %p452 = scmp.lt.s32.totalorder %s18, 1
        %s453 = scalar_select %p452, %s18, 1
        %p454 = scmp.lt.s32.totalorder %s451, 1
        %s455 = scalar_select %p454, %s451, 1
        %s456 = smul.addr %s453, 2
        %s457 = sadd.s32 %s455, %s456
        %s458 = smul.addr %s457, 4
        %s459 = scalar_lea.vmem %s1, %s458
      $region36: #{image_clip_forward.16} parent=31 // pred_fallthru
        _
    $region32: #{image_clip_forward.16} parent=5 // pred_fallthru
      _
  $region6: #{image_clip_forward.16} parent=0 // loop_footer
    %s11 = sadd.s32 1, %s7
  $region7: #{image_clip_forward.16} parent=0 // loop_footer_branch
    %6 = sbr.rel target = $region3
  $region8: #{image_clip_forward.16} parent=0 // loop_exit
    _

// kernel: image_clip_forward.17
$region0: #{image_clip_forward.17}
  #allocation0 [shape = 'u32[]', space=smem, size = 0x4, offset = 0x4, fixed_abs, tag = 'smem constant byte address 0x4 - core index']
  #allocation1 [shape = 'u32[144,128]{1,0:T(1,128)}', space=vmem, size = 0x12000, scoped, tag = 'internal scratch']
  %s0 = inlined_call_operand.vmem [shape: bf16[32,32], index: 0, kind: input, shape index: {}]
  %s1 = inlined_call_operand.vmem [shape: bf16[32,32], index: 1, kind: input, shape index: {}]
  %s2 = inlined_call_operand.vmem [shape: f32[1,32], index: 2, kind: input, shape index: {}]
  %s3 = inlined_call_operand.vmem [shape: bf16[32,32], index: 3, kind: input, shape index: {}]
  %s4 = inlined_call_operand.vmem [shape: bf16[32,32], index: 4, kind: output, shape index: {}]
  %s5 = sld [smem:[#allocation0]]
  $region26: #{image_clip_forward.17} parent=0
    _
  %s7 = ssub.s32 1, %s5
  %s8 = scalar_select 0, %s7, %s5
  // Predicated region
  $region2: #{image_clip_forward.17} parent=0 // pred_check
    _
  $region3: #{image_clip_forward.17} parent=0 // pred_check_branch
    %10 = sbr.rel (0) target = $region5
  $region4: #{image_clip_forward.17} parent=0 // pred_region
    _
  $region5: #{image_clip_forward.17} parent=0 // pred_fallthru
    _
  // Predicated region
  $region6: #{image_clip_forward.17} parent=0 // pred_check
    _
  $region7: #{image_clip_forward.17} parent=0 // pred_check_branch
    %12 = sbr.rel (0) target = $region9
  $region8: #{image_clip_forward.17} parent=0 // pred_region
    _
  $region9: #{image_clip_forward.17} parent=0 // pred_fallthru
    _
  // Predicated region
  $region10: #{image_clip_forward.17} parent=0 // pred_check
    _
  $region11: #{image_clip_forward.17} parent=0 // pred_check_branch
    %14 = sbr.rel (0) target = $region13
  $region12: #{image_clip_forward.17} parent=0 // pred_region
    _
  $region13: #{image_clip_forward.17} parent=0 // pred_fallthru
    _
  // Predicated region
  $region14: #{image_clip_forward.17} parent=0 // pred_check
    _
  $region15: #{image_clip_forward.17} parent=0 // pred_check_branch
    %16 = sbr.rel (0) target = $region17
  $region16: #{image_clip_forward.17} parent=0 // pred_region
    _
  $region17: #{image_clip_forward.17} parent=0 // pred_fallthru
    _
  %v18 = vld [vmem:[%s0] sm:$0xf]
  %v19 = vld [vmem:[%s0 + $0x4] sm:$0xf]
  %v20 = vld [vmem:[%s0 + $0x8] sm:$0xf]
  %v21 = vld [vmem:[%s0 + $0xc] sm:$0xf]
  %v22 = vld [vmem:[%s1] sm:$0xf]
  %v23 = vld [vmem:[%s1 + $0x4] sm:$0xf]
  %v24 = vld [vmem:[%s1 + $0x8] sm:$0xf]
  %v25 = vld [vmem:[%s1 + $0xc] sm:$0xf]
  %v26 = vld [vmem:[%s2] sm:$0x1]
  %v28 = vlaneseq
  %v29 = vshrl.u32 %v28, 7
  %v30 = vsub.s32 0, %v29
  %v31 = vrot.slane %v26, %v30
  %v37 = vunpack.c.l.b16 %v18
  %v38 = vunpack.c.l.b16 %v19
  %v39 = vunpack.c.l.b16 %v20
  %v40 = vunpack.c.l.b16 %v21
  %v41 = vpack.c.b16 %v38, %v37
  %v42 = vpack.c.b16 %v40, %v39
  %v47 = vunpack.c.l.b16 %v22
  %v48 = vunpack.c.l.b16 %v23
  %v49 = vunpack.c.l.b16 %v24
  %v50 = vunpack.c.l.b16 %v25
  %v51 = vpack.c.b16 %v48, %v47
  %v52 = vpack.c.b16 %v50, %v49
  %vm55 = vcmask 261120
  %v57 = vsel %vm55, %v41, 0
  %v60 = vsel %vm55, %v42, 0
  %62 = vmatprep.subr.bf16.mxu0 0
  %63 = vmatpush1.bf16.msra.mxu0 0
  %64 = vmatprep.subr.bf16.mxu0 0
  %65 = vmatpush1.bf16.msra.mxu0 0
  %66 = vmatprep.subr.bf16.mxu0 0
  %67 = vmatpush1.bf16.msra.mxu0 0
  %68 = vmatprep.subr.bf16.mxu0 0
  %69 = vmatpush1.bf16.msra.mxu0 0
  %70 = vmatprep.subr.bf16.mxu0 0
  %71 = vmatpush1.bf16.msra.mxu0 0
  %72 = vmatprep.subr.bf16.mxu0 0
  %73 = vmatpush1.bf16.msra.mxu0 0
  %74 = vmatprep.subr.bf16.mxu0 0
  %75 = vmatpush1.bf16.msra.mxu0 %v52
  %76 = vmatprep.subr.bf16.mxu0 0
  %77 = vmatpush1.bf16.msra.mxu0 %v51
  %78 = vmatprep.subr.bf16.mxu0 0
  %79 = vmatpush2.bf16.msra.mxu0 0
  %80 = vmatprep.subr.bf16.mxu0 0
  %81 = vmatpush2.bf16.msra.mxu0 0
  %82 = vmatprep.subr.bf16.mxu0 0
  %83 = vmatpush2.bf16.msra.mxu0 0
  %84 = vmatprep.subr.bf16.mxu0 0
  %85 = vmatpush2.bf16.msra.mxu0 0
  %86 = vmatprep.subr.bf16.mxu0 0
  %87 = vmatpush2.bf16.msra.mxu0 0
  %88 = vmatprep.subr.bf16.mxu0 0
  %89 = vmatpush2.bf16.msra.mxu0 0
  %90 = vmatprep.subr.bf16.mxu0 0
  %91 = vmatpush2.bf16.msra.mxu0 0
  %92 = vmatprep.subr.bf16.mxu0 0
  %93 = vmatpush2.bf16.msra.mxu0 0
  %94 = vmatprep.mubr.bf16.mxu0 0
  %95 = vmatmul.mubr.bf16.gmra.mxu0 %v57
  %v96 = vpop.f32.mrf.mxu0
  %v97 = vadd.f32 %v31, %v96
  %v98 = vpop.f32.mrf.mxu0
  %v99 = vpop.f32.mrf.mxu0
  %v100 = vadd.f32 %v31, %v99
  %v101 = vpop.f32.mrf.mxu0
  %102 = vmatprep.mubr.bf16.mxu0 0
  %103 = vmatmul.mubr.bf16.gmra.mxu0 %v60
  %v104 = vpop.f32.mrf.mxu0
  %v105 = vadd.f32 %v31, %v104
  %v106 = vpop.f32.mrf.mxu0
  %v107 = vpop.f32.mrf.mxu0
  %v108 = vadd.f32 %v31, %v107
  %v109 = vpop.f32.mrf.mxu0
  %110 = vdwg.mxu0
  %v111 = vld [vmem:[%s3] sm:$0xf]
  %v112 = vld [vmem:[%s3 + $0x4] sm:$0xf]
  %v113 = vld [vmem:[%s3 + $0x8] sm:$0xf]
  %v114 = vld [vmem:[%s3 + $0xc] sm:$0xf]
  %v115 = vunpack.c.l.bf16 %v111
  %v116 = vunpack.c.l.bf16 %v112
  %v117 = vunpack.c.l.bf16 %v113
  %v118 = vunpack.c.l.bf16 %v114
  %v119 = vadd.f32 %v97, %v115
  %v120 = vadd.f32 %v100, %v116
  %v121 = vadd.f32 %v105, %v117
  %v122 = vadd.f32 %v108, %v118
  %v123 = vpack.c.bf16 %v120, %v119
  %v124 = vpack.c.bf16 %v122, %v121
  %v127 = vunpack.c.l.b16 %v123
  %v128 = vunpack.c.h.b16 %v123
  %v129 = vunpack.c.l.b16 %v124
  %v130 = vunpack.c.h.b16 %v124
  %v131 = vpack.c.b16 %v127, %v127
  %v132 = vpack.c.b16 %v128, %v128
  %v133 = vpack.c.b16 %v129, %v129
  %v134 = vpack.c.b16 %v130, %v130
  %vm139 = vcmask 257024
  %140 = vst.msk [vmem:[%s4] sm:$0xf] %vm139, %v131
  %141 = vst.msk [vmem:[%s4 + $0x4] sm:$0xf] %vm139, %v132
  %142 = vst.msk [vmem:[%s4 + $0x8] sm:$0xf] %vm139, %v133
  %143 = vst.msk [vmem:[%s4 + $0xc] sm:$0xf] %vm139, %v134
  // Predicated region
  $region18: #{image_clip_forward.17} parent=0 // pred_check
    _
  $region19: #{image_clip_forward.17} parent=0 // pred_check_branch
    %145 = sbr.rel (0) target = $region21
  $region20: #{image_clip_forward.17} parent=0 // pred_region
    _
  $region21: #{image_clip_forward.17} parent=0 // pred_fallthru
    _
  // Predicated region
  $region22: #{image_clip_forward.17} parent=0 // pred_check
    _
  $region23: #{image_clip_forward.17} parent=0 // pred_check_branch
    %147 = sbr.rel (0) target = $region25
  $region24: #{image_clip_forward.17} parent=0 // pred_region
    _
  $region25: #{image_clip_forward.17} parent=0 // pred_fallthru
    _

// kernel: image_clip_forward.18
$region0: #{image_clip_forward.18}
  #allocation0 [shape = 'u32[]', space=smem, size = 0x4, offset = 0x4, fixed_abs, tag = 'smem constant byte address 0x4 - core index']
  #allocation1 [shape = 'u32[144,128]{1,0:T(1,128)}', space=vmem, size = 0x12000, scoped, tag = 'internal scratch']
  %s0 = inlined_call_operand.vmem [shape: bf16[32,32], index: 0, kind: input, shape index: {}]
  %s1 = inlined_call_operand.vmem [shape: bf16[32,128], index: 1, kind: input, shape index: {}]
  %s2 = inlined_call_operand.vmem [shape: f32[1,32], index: 2, kind: input, shape index: {}]
  %s3 = inlined_call_operand.vmem [shape: f32[1,32], index: 3, kind: input, shape index: {}]
  %s4 = inlined_call_operand.vmem [shape: f32[1,128], index: 4, kind: input, shape index: {}]
  %s5 = inlined_call_operand.vmem [shape: bf16[32,128], index: 5, kind: output, shape index: {}]
  %s6 = sld [smem:[#allocation0]]
  $region30: #{image_clip_forward.18} parent=0
    _
  %s8 = ssub.s32 1, %s6
  %s9 = scalar_select 0, %s8, %s6
  // Predicated region
  $region2: #{image_clip_forward.18} parent=0 // pred_check
    _
  $region3: #{image_clip_forward.18} parent=0 // pred_check_branch
    %11 = sbr.rel (0) target = $region5
  $region4: #{image_clip_forward.18} parent=0 // pred_region
    _
  $region5: #{image_clip_forward.18} parent=0 // pred_fallthru
    _
  // Predicated region
  $region6: #{image_clip_forward.18} parent=0 // pred_check
    _
  $region7: #{image_clip_forward.18} parent=0 // pred_check_branch
    %13 = sbr.rel (0) target = $region9
  $region8: #{image_clip_forward.18} parent=0 // pred_region
    _
  $region9: #{image_clip_forward.18} parent=0 // pred_fallthru
    _
  // Predicated region
  $region10: #{image_clip_forward.18} parent=0 // pred_check
    _
  $region11: #{image_clip_forward.18} parent=0 // pred_check_branch
    %15 = sbr.rel (0) target = $region13
  $region12: #{image_clip_forward.18} parent=0 // pred_region
    _
  $region13: #{image_clip_forward.18} parent=0 // pred_fallthru
    _
  // Predicated region
  $region14: #{image_clip_forward.18} parent=0 // pred_check
    _
  $region15: #{image_clip_forward.18} parent=0 // pred_check_branch
    %17 = sbr.rel (0) target = $region17
  $region16: #{image_clip_forward.18} parent=0 // pred_region
    _
  $region17: #{image_clip_forward.18} parent=0 // pred_fallthru
    _
  // Predicated region
  $region18: #{image_clip_forward.18} parent=0 // pred_check
    _
  $region19: #{image_clip_forward.18} parent=0 // pred_check_branch
    %19 = sbr.rel (0) target = $region21
  $region20: #{image_clip_forward.18} parent=0 // pred_region
    _
  $region21: #{image_clip_forward.18} parent=0 // pred_fallthru
    _
  %v21 = vld [vmem:[%s0] sm:$0xf]
  %v22 = vld [vmem:[%s0 + $0x4] sm:$0xf]
  %v23 = vld [vmem:[%s0 + $0x8] sm:$0xf]
  %v24 = vld [vmem:[%s0 + $0xc] sm:$0xf]
  %v25 = vunpack.c.l.bf16 %v21
  %v26 = vunpack.c.l.bf16 %v22
  %v27 = vunpack.c.l.bf16 %v23
  %v28 = vunpack.c.l.bf16 %v24
  %vm29 = vcmask 261120
  %v30 = vsel %vm29, %v25, 0.0
  %31 = vadd.xlane.f32.xlu0 %v30
  %v32 = vpop.xlane.xlu0 %31
  %v33 = vsel %vm29, %v26, 0.0
  %34 = vadd.xlane.f32.xlu0 %v33
  %v35 = vpop.xlane.xlu0 %34
  %v36 = vsel %vm29, %v27, 0.0
  %37 = vadd.xlane.f32.xlu0 %v36
  %v38 = vpop.xlane.xlu0 %37
  %v39 = vsel %vm29, %v28, 0.0
  %40 = vadd.xlane.f32.xlu0 %v39
  %v41 = vpop.xlane.xlu0 %40
  %v42 = vrcp.pop 32.0
  %v43 = vmul.f32 %v32, %v42
  %v44 = vmul.f32 %v35, %v42
  %v45 = vmul.f32 %v38, %v42
  %v46 = vmul.f32 %v41, %v42
  %v47 = vsub.f32 %v25, %v43
  %v48 = vsub.f32 %v26, %v44
  %v49 = vsub.f32 %v27, %v45
  %v50 = vsub.f32 %v28, %v46
  %v51 = vmul.f32 %v47, %v47
  %v52 = vmul.f32 %v48, %v48
  %v53 = vmul.f32 %v49, %v49
  %v54 = vmul.f32 %v50, %v50
  %v55 = vsel %vm29, %v51, 0.0
  %56 = vadd.xlane.f32.xlu0 %v55
  %v57 = vpop.xlane.xlu0 %56
  %v58 = vsel %vm29, %v52, 0.0
  %59 = vadd.xlane.f32.xlu0 %v58
  %v60 = vpop.xlane.xlu0 %59
  %v61 = vsel %vm29, %v53, 0.0
  %62 = vadd.xlane.f32.xlu0 %v61
  %v63 = vpop.xlane.xlu0 %62
  %v64 = vsel %vm29, %v54, 0.0
  %65 = vadd.xlane.f32.xlu0 %v64
  %v66 = vpop.xlane.xlu0 %65
  %v67 = vmul.f32 %v57, %v42
  %v68 = vmul.f32 %v60, %v42
  %v69 = vmul.f32 %v63, %v42
  %v70 = vmul.f32 %v66, %v42
  %v71 = vadd.f32 %v67, 1e-05
  %v72 = vadd.f32 %v68, 1e-05
  %v73 = vadd.f32 %v69, 1e-05
  %v74 = vadd.f32 %v70, 1e-05
  %v75 = vrsqrt.pop %v71
  %v76 = vrsqrt.pop %v72
  %v77 = vrsqrt.pop %v73
  %v78 = vrsqrt.pop %v74
  %v79 = vmul.f32 %v47, %v75
  %v80 = vmul.f32 %v48, %v76
  %v81 = vmul.f32 %v49, %v77
  %v82 = vmul.f32 %v50, %v78
  %v83 = vld [vmem:[%s2] sm:$0x1]
  %v85 = vlaneseq
  %v86 = vshrl.u32 %v85, 7
  %v87 = vsub.s32 0, %v86
  %v88 = vrot.slane %v83, %v87
  %v90 = vmul.f32 %v79, %v88
  %v91 = vmul.f32 %v80, %v88
  %v92 = vmul.f32 %v81, %v88
  %v93 = vmul.f32 %v82, %v88
  %v94 = vld [vmem:[%s3] sm:$0x1]
  %v96 = vlaneseq
  %v97 = vshrl.u32 %v96, 7
  %v98 = vsub.s32 0, %v97
  %v99 = vrot.slane %v94, %v98
  %v101 = vadd.f32 %v90, %v99
  %v102 = vadd.f32 %v91, %v99
  %v103 = vadd.f32 %v92, %v99
  %v104 = vadd.f32 %v93, %v99
  %v105 = vpack.c.bf16 %v102, %v101
  %v106 = vpack.c.bf16 %v104, %v103
  %v107 = vld [vmem:[%s1] sm:$0xf]
  %v108 = vld [vmem:[%s1 + $0x4] sm:$0xf]
  %v109 = vld [vmem:[%s1 + $0x8] sm:$0xf]
  %v110 = vld [vmem:[%s1 + $0xc] sm:$0xf]
  %v111 = vld [vmem:[%s4] sm:$0x1]
  %v113 = vlaneseq
  %v114 = vshrl.u32 %v113, 7
  %v115 = vsub.s32 0, %v114
  %v116 = vrot.slane %v111, %v115
  %v122 = vunpack.c.l.b16 %v107
  %v123 = vunpack.c.l.b16 %v108
  %v124 = vunpack.c.l.b16 %v109
  %v125 = vunpack.c.l.b16 %v110
  %v126 = vpack.c.b16 %v123, %v122
  %v127 = vpack.c.b16 %v125, %v124
  %v131 = vsel %vm29, %v105, 0
  %v134 = vsel %vm29, %v106, 0
  %136 = vmatprep.subr.bf16.mxu0 0
  %137 = vmatpush1.bf16.msra.mxu0 0
  %138 = vmatprep.subr.bf16.mxu0 0
  %139 = vmatpush1.bf16.msra.mxu0 0
  %140 = vmatprep.subr.bf16.mxu0 0
  %141 = vmatpush1.bf16.msra.mxu0 0
  %142 = vmatprep.subr.bf16.mxu0 0
  %143 = vmatpush1.bf16.msra.mxu0 0
  %144 = vmatprep.subr.bf16.mxu0 0
  %145 = vmatpush1.bf16.msra.mxu0 0
  %146 = vmatprep.subr.bf16.mxu0 0
  %147 = vmatpush1.bf16.msra.mxu0 0
  %148 = vmatprep.subr.bf16.mxu0 0
  %149 = vmatpush1.bf16.msra.mxu0 %v127
  %150 = vmatprep.subr.bf16.mxu0 0
  %151 = vmatpush1.bf16.msra.mxu0 %v126
  %152 = vmatprep.subr.bf16.mxu0 0
  %153 = vmatpush2.bf16.msra.mxu0 0
  %154 = vmatprep.subr.bf16.mxu0 0
  %155 = vmatpush2.bf16.msra.mxu0 0
  %156 = vmatprep.subr.bf16.mxu0 0
  %157 = vmatpush2.bf16.msra.mxu0 0
  %158 = vmatprep.subr.bf16.mxu0 0
  %159 = vmatpush2.bf16.msra.mxu0 0
  %160 = vmatprep.subr.bf16.mxu0 0
  %161 = vmatpush2.bf16.msra.mxu0 0
  %162 = vmatprep.subr.bf16.mxu0 0
  %163 = vmatpush2.bf16.msra.mxu0 0
  %164 = vmatprep.subr.bf16.mxu0 0
  %165 = vmatpush2.bf16.msra.mxu0 0
  %166 = vmatprep.subr.bf16.mxu0 0
  %167 = vmatpush2.bf16.msra.mxu0 0
  %168 = vmatprep.mubr.bf16.mxu0 0
  %169 = vmatmul.mubr.bf16.gmra.mxu0 %v131
  %v170 = vpop.f32.mrf.mxu0
  %v171 = vadd.f32 %v116, %v170
  %v172 = vpop.f32.mrf.mxu0
  %v173 = vpop.f32.mrf.mxu0
  %v174 = vadd.f32 %v116, %v173
  %v175 = vpop.f32.mrf.mxu0
  %176 = vmatprep.mubr.bf16.mxu0 0
  %177 = vmatmul.mubr.bf16.gmra.mxu0 %v134
  %v178 = vpop.f32.mrf.mxu0
  %v179 = vadd.f32 %v116, %v178
  %v180 = vpop.f32.mrf.mxu0
  %v181 = vpop.f32.mrf.mxu0
  %v182 = vadd.f32 %v116, %v181
  %v183 = vpop.f32.mrf.mxu0
  %184 = vdwg.mxu0
  %v185 = vmul.f32 %v171, 1.702
  %v186 = vmul.f32 %v174, 1.702
  %v187 = vmul.f32 %v179, 1.702
  %v188 = vmul.f32 %v182, 1.702
  %v189 = vxor.u32 %v185, 2147483648
  %v190 = vxor.u32 %v186, 2147483648
  %v191 = vxor.u32 %v187, 2147483648
  %v192 = vxor.u32 %v188, 2147483648
  %v193 = vmul.f32 %v189, 1.442695
  %v194 = vpow.pop %v193
  %v195 = vmul.f32 %v190, 1.442695
  %v196 = vpow.pop %v195
  %v197 = vmul.f32 %v191, 1.442695
  %v198 = vpow.pop %v197
  %v199 = vmul.f32 %v192, 1.442695
  %v200 = vpow.pop %v199
  %v201 = vadd.f32 %v194, 1.0
  %v202 = vadd.f32 %v196, 1.0
  %v203 = vadd.f32 %v198, 1.0
  %v204 = vadd.f32 %v200, 1.0
  %v205 = vrcp.pop %v201
  %v206 = vmul.f32 1.0, %v205
  %v207 = vrcp.pop %v202
  %v208 = vmul.f32 1.0, %v207
  %v209 = vrcp.pop %v203
  %v210 = vmul.f32 1.0, %v209
  %v211 = vrcp.pop %v204
  %v212 = vmul.f32 1.0, %v211
  %v213 = vmul.f32 %v171, %v206
  %v214 = vmul.f32 %v174, %v208
  %v215 = vmul.f32 %v179, %v210
  %v216 = vmul.f32 %v182, %v212
  %v217 = vpack.c.bf16 %v214, %v213
  %v218 = vpack.c.bf16 %v216, %v215
  %v221 = vunpack.c.l.b16 %v217
  %v222 = vunpack.c.h.b16 %v217
  %v223 = vunpack.c.l.b16 %v218
  %v224 = vunpack.c.h.b16 %v218
  %v225 = vpack.c.b16 %v221, %v221
  %v226 = vpack.c.b16 %v222, %v222
  %v227 = vpack.c.b16 %v223, %v223
  %v228 = vpack.c.b16 %v224, %v224
  %233 = vst [vmem:[%s5] sm:$0xf] %v225
  %234 = vst [vmem:[%s5 + $0x4] sm:$0xf] %v226
  %235 = vst [vmem:[%s5 + $0x8] sm:$0xf] %v227
  %236 = vst [vmem:[%s5 + $0xc] sm:$0xf] %v228
  // Predicated region
  $region22: #{image_clip_forward.18} parent=0 // pred_check
    _
  $region23: #{image_clip_forward.18} parent=0 // pred_check_branch
    %238 = sbr.rel (0) target = $region25
  $region24: #{image_clip_forward.18} parent=0 // pred_region
    _
  $region25: #{image_clip_forward.18} parent=0 // pred_fallthru
    _
  // Predicated region
  $region26: #{image_clip_forward.18} parent=0 // pred_check
    _
  $region27: #{image_clip_forward.18} parent=0 // pred_check_branch
    %240 = sbr.rel (0) target = $region29
  $region28: #{image_clip_forward.18} parent=0 // pred_region
    _
  $region29: #{image_clip_forward.18} parent=0 // pred_fallthru
    _

// kernel: image_clip_forward.19
$region0: #{image_clip_forward.19}
  #allocation0 [shape = 'u32[]', space=smem, size = 0x4, offset = 0x4, fixed_abs, tag = 'smem constant byte address 0x4 - core index']
  #allocation1 [shape = 'u32[144,128]{1,0:T(1,128)}', space=vmem, size = 0x12000, scoped, tag = 'internal scratch']
  %s0 = inlined_call_operand.vmem [shape: bf16[32,128], index: 0, kind: input, shape index: {}]
  %s1 = inlined_call_operand.vmem [shape: bf16[128,32], index: 1, kind: input, shape index: {}]
  %s2 = inlined_call_operand.vmem [shape: f32[1,32], index: 2, kind: input, shape index: {}]
  %s3 = inlined_call_operand.vmem [shape: bf16[32,32], index: 3, kind: input, shape index: {}]
  %s4 = inlined_call_operand.vmem [shape: bf16[32,32], index: 4, kind: output, shape index: {}]
  %s5 = sld [smem:[#allocation0]]
  $region26: #{image_clip_forward.19} parent=0
    _
  %s7 = ssub.s32 1, %s5
  %s8 = scalar_select 0, %s7, %s5
  // Predicated region
  $region2: #{image_clip_forward.19} parent=0 // pred_check
    _
  $region3: #{image_clip_forward.19} parent=0 // pred_check_branch
    %10 = sbr.rel (0) target = $region5
  $region4: #{image_clip_forward.19} parent=0 // pred_region
    _
  $region5: #{image_clip_forward.19} parent=0 // pred_fallthru
    _
  // Predicated region
  $region6: #{image_clip_forward.19} parent=0 // pred_check
    _
  $region7: #{image_clip_forward.19} parent=0 // pred_check_branch
    %12 = sbr.rel (0) target = $region9
  $region8: #{image_clip_forward.19} parent=0 // pred_region
    _
  $region9: #{image_clip_forward.19} parent=0 // pred_fallthru
    _
  // Predicated region
  $region10: #{image_clip_forward.19} parent=0 // pred_check
    _
  $region11: #{image_clip_forward.19} parent=0 // pred_check_branch
    %14 = sbr.rel (0) target = $region13
  $region12: #{image_clip_forward.19} parent=0 // pred_region
    _
  $region13: #{image_clip_forward.19} parent=0 // pred_fallthru
    _
  // Predicated region
  $region14: #{image_clip_forward.19} parent=0 // pred_check
    _
  $region15: #{image_clip_forward.19} parent=0 // pred_check_branch
    %16 = sbr.rel (0) target = $region17
  $region16: #{image_clip_forward.19} parent=0 // pred_region
    _
  $region17: #{image_clip_forward.19} parent=0 // pred_fallthru
    _
  %v18 = vld [vmem:[%s0] sm:$0xf]
  %v19 = vld [vmem:[%s0 + $0x4] sm:$0xf]
  %v20 = vld [vmem:[%s0 + $0x8] sm:$0xf]
  %v21 = vld [vmem:[%s0 + $0xc] sm:$0xf]
  %v22 = vld [vmem:[%s1] sm:$0xf]
  %v23 = vld [vmem:[%s1 + $0x4] sm:$0xf]
  %v24 = vld [vmem:[%s1 + $0x8] sm:$0xf]
  %v25 = vld [vmem:[%s1 + $0xc] sm:$0xf]
  %v26 = vld [vmem:[%s1 + $0x10] sm:$0xf]
  %v27 = vld [vmem:[%s1 + $0x14] sm:$0xf]
  %v28 = vld [vmem:[%s1 + $0x18] sm:$0xf]
  %v29 = vld [vmem:[%s1 + $0x1c] sm:$0xf]
  %v30 = vld [vmem:[%s1 + $0x20] sm:$0xf]
  %v31 = vld [vmem:[%s1 + $0x24] sm:$0xf]
  %v32 = vld [vmem:[%s1 + $0x28] sm:$0xf]
  %v33 = vld [vmem:[%s1 + $0x2c] sm:$0xf]
  %v34 = vld [vmem:[%s1 + $0x30] sm:$0xf]
  %v35 = vld [vmem:[%s1 + $0x34] sm:$0xf]
  %v36 = vld [vmem:[%s1 + $0x38] sm:$0xf]
  %v37 = vld [vmem:[%s1 + $0x3c] sm:$0xf]
  %v38 = vld [vmem:[%s2] sm:$0x1]
  %v40 = vlaneseq
  %v41 = vshrl.u32 %v40, 7
  %v42 = vsub.s32 0, %v41
  %v43 = vrot.slane %v38, %v42
  %v49 = vunpack.c.l.b16 %v18
  %v50 = vunpack.c.l.b16 %v19
  %v51 = vunpack.c.l.b16 %v20
  %v52 = vunpack.c.l.b16 %v21
  %v53 = vpack.c.b16 %v50, %v49
  %v54 = vpack.c.b16 %v52, %v51
  %v73 = vunpack.c.l.b16 %v22
  %v74 = vunpack.c.l.b16 %v23
  %v75 = vunpack.c.l.b16 %v24
  %v76 = vunpack.c.l.b16 %v25
  %v77 = vunpack.c.l.b16 %v26
  %v78 = vunpack.c.l.b16 %v27
  %v79 = vunpack.c.l.b16 %v28
  %v80 = vunpack.c.l.b16 %v29
  %v81 = vunpack.c.l.b16 %v30
  %v82 = vunpack.c.l.b16 %v31
  %v83 = vunpack.c.l.b16 %v32
  %v84 = vunpack.c.l.b16 %v33
  %v85 = vunpack.c.l.b16 %v34
  %v86 = vunpack.c.l.b16 %v35
  %v87 = vunpack.c.l.b16 %v36
  %v88 = vunpack.c.l.b16 %v37
  %v89 = vpack.c.b16 %v74, %v73
  %v90 = vpack.c.b16 %v76, %v75
  %v91 = vpack.c.b16 %v78, %v77
  %v92 = vpack.c.b16 %v80, %v79
  %v93 = vpack.c.b16 %v82, %v81
  %v94 = vpack.c.b16 %v84, %v83
  %v95 = vpack.c.b16 %v86, %v85
  %v96 = vpack.c.b16 %v88, %v87
  %105 = vmatprep.subr.bf16.mxu0 0
  %106 = vmatpush1.bf16.msra.mxu0 %v96
  %107 = vmatprep.subr.bf16.mxu0 0
  %108 = vmatpush1.bf16.msra.mxu0 %v95
  %109 = vmatprep.subr.bf16.mxu0 0
  %110 = vmatpush1.bf16.msra.mxu0 %v94
  %111 = vmatprep.subr.bf16.mxu0 0
  %112 = vmatpush1.bf16.msra.mxu0 %v93
  %113 = vmatprep.subr.bf16.mxu0 0
  %114 = vmatpush1.bf16.msra.mxu0 %v92
  %115 = vmatprep.subr.bf16.mxu0 0
  %116 = vmatpush1.bf16.msra.mxu0 %v91
  %117 = vmatprep.subr.bf16.mxu0 0
  %118 = vmatpush1.bf16.msra.mxu0 %v90
  %119 = vmatprep.subr.bf16.mxu0 0
  %120 = vmatpush1.bf16.msra.mxu0 %v89
  %121 = vmatprep.subr.bf16.mxu0 0
  %122 = vmatpush2.bf16.msra.mxu0 0
  %123 = vmatprep.subr.bf16.mxu0 0
  %124 = vmatpush2.bf16.msra.mxu0 0
  %125 = vmatprep.subr.bf16.mxu0 0
  %126 = vmatpush2.bf16.msra.mxu0 0
  %127 = vmatprep.subr.bf16.mxu0 0
  %128 = vmatpush2.bf16.msra.mxu0 0
  %129 = vmatprep.subr.bf16.mxu0 0
  %130 = vmatpush2.bf16.msra.mxu0 0
  %131 = vmatprep.subr.bf16.mxu0 0
  %132 = vmatpush2.bf16.msra.mxu0 0
  %133 = vmatprep.subr.bf16.mxu0 0
  %134 = vmatpush2.bf16.msra.mxu0 0
  %135 = vmatprep.subr.bf16.mxu0 0
  %136 = vmatpush2.bf16.msra.mxu0 0
  %137 = vmatprep.mubr.bf16.mxu0 0
  %138 = vmatmul.mubr.bf16.gmra.mxu0 %v53
  %v139 = vpop.f32.mrf.mxu0
  %v140 = vadd.f32 %v43, %v139
  %v141 = vpop.f32.mrf.mxu0
  %v142 = vpop.f32.mrf.mxu0
  %v143 = vadd.f32 %v43, %v142
  %v144 = vpop.f32.mrf.mxu0
  %145 = vmatprep.mubr.bf16.mxu0 0
  %146 = vmatmul.mubr.bf16.gmra.mxu0 %v54
  %v147 = vpop.f32.mrf.mxu0
  %v148 = vadd.f32 %v43, %v147
  %v149 = vpop.f32.mrf.mxu0
  %v150 = vpop.f32.mrf.mxu0
  %v151 = vadd.f32 %v43, %v150
  %v152 = vpop.f32.mrf.mxu0
  %153 = vdwg.mxu0
  %v154 = vld [vmem:[%s3] sm:$0xf]
  %v155 = vld [vmem:[%s3 + $0x4] sm:$0xf]
  %v156 = vld [vmem:[%s3 + $0x8] sm:$0xf]
  %v157 = vld [vmem:[%s3 + $0xc] sm:$0xf]
  %v158 = vunpack.c.l.bf16 %v154
  %v159 = vunpack.c.l.bf16 %v155
  %v160 = vunpack.c.l.bf16 %v156
  %v161 = vunpack.c.l.bf16 %v157
  %v162 = vadd.f32 %v140, %v158
  %v163 = vadd.f32 %v143, %v159
  %v164 = vadd.f32 %v148, %v160
  %v165 = vadd.f32 %v151, %v161
  %v166 = vpack.c.bf16 %v163, %v162
  %v167 = vpack.c.bf16 %v165, %v164
  %v170 = vunpack.c.l.b16 %v166
  %v171 = vunpack.c.h.b16 %v166
  %v172 = vunpack.c.l.b16 %v167
  %v173 = vunpack.c.h.b16 %v167
  %v174 = vpack.c.b16 %v170, %v170
  %v175 = vpack.c.b16 %v171, %v171
  %v176 = vpack.c.b16 %v172, %v172
  %v177 = vpack.c.b16 %v173, %v173
  %vm182 = vcmask 257024
  %183 = vst.msk [vmem:[%s4] sm:$0xf] %vm182, %v174
  %184 = vst.msk [vmem:[%s4 + $0x4] sm:$0xf] %vm182, %v175
  %185 = vst.msk [vmem:[%s4 + $0x8] sm:$0xf] %vm182, %v176
  %186 = vst.msk [vmem:[%s4 + $0xc] sm:$0xf] %vm182, %v177
  // Predicated region
  $region18: #{image_clip_forward.19} parent=0 // pred_check
    _
  $region19: #{image_clip_forward.19} parent=0 // pred_check_branch
    %188 = sbr.rel (0) target = $region21
  $region20: #{image_clip_forward.19} parent=0 // pred_region
    _
  $region21: #{image_clip_forward.19} parent=0 // pred_fallthru
    _
  // Predicated region
  $region22: #{image_clip_forward.19} parent=0 // pred_check
    _
  $region23: #{image_clip_forward.19} parent=0 // pred_check_branch
    %190 = sbr.rel (0) target = $region25
  $region24: #{image_clip_forward.19} parent=0 // pred_region
    _
  $region25: #{image_clip_forward.19} parent=0 // pred_fallthru
    _

// kernel: image_clip_forward.25
$region0: #{image_clip_forward.25}
  #allocation0 [shape = 'u32[]', space=smem, size = 0x4, offset = 0x4, fixed_abs, tag = 'smem constant byte address 0x4 - core index']
  #allocation1 [shape = 'u32[144,128]{1,0:T(1,128)}', space=vmem, size = 0x12000, scoped, tag = 'internal scratch']
  %s0 = inlined_call_operand.vmem [shape: bf16[2,32], index: 0, kind: input, shape index: {}]
  %s1 = inlined_call_operand.vmem [shape: bf16[32,16], index: 1, kind: input, shape index: {}]
  %s2 = inlined_call_operand.vmem [shape: f32[1,32], index: 2, kind: input, shape index: {}]
  %s3 = inlined_call_operand.vmem [shape: f32[1,32], index: 3, kind: input, shape index: {}]
  %s4 = inlined_call_operand.hbm [shape: f32[2,16], index: 4, kind: output, shape index: {}]
  %s5 = sld [smem:[#allocation0]]
  $region26: #{image_clip_forward.25} parent=0
    _
  %s7 = ssub.s32 1, %s5
  %s8 = scalar_select 0, %s7, %s5
  $region1: #{image_clip_forward.25} parent=0
    #allocation2 [shape = 'u8[1024]{0}', space=vmem, size = 0x400, scoped, tag = 'output window, operand 0, single buffered']
    #allocation3 [shape = 's32[1]{0}', space=sflag, size = 0x4, scoped, tag = 'scoped memory for image_clip_forward.25']
    %9 = vsyncpa [#allocation3], 0
    // Predicated region
    $region2: #{image_clip_forward.25} parent=1 // pred_check
      _
    $region3: #{image_clip_forward.25} parent=1 // pred_check_branch
      %11 = sbr.rel (0) target = $region5
    $region4: #{image_clip_forward.25} parent=1 // pred_region
      _
    $region5: #{image_clip_forward.25} parent=1 // pred_fallthru
      _
    // Predicated region
    $region6: #{image_clip_forward.25} parent=1 // pred_check
      _
    $region7: #{image_clip_forward.25} parent=1 // pred_check_branch
      %13 = sbr.rel (0) target = $region9
    $region8: #{image_clip_forward.25} parent=1 // pred_region
      _
    $region9: #{image_clip_forward.25} parent=1 // pred_fallthru
      _
    // Predicated region
    $region10: #{image_clip_forward.25} parent=1 // pred_check
      _
    $region11: #{image_clip_forward.25} parent=1 // pred_check_branch
      %15 = sbr.rel (0) target = $region13
    $region12: #{image_clip_forward.25} parent=1 // pred_region
      _
    $region13: #{image_clip_forward.25} parent=1 // pred_fallthru
      _
    // Predicated region
    $region14: #{image_clip_forward.25} parent=1 // pred_check
      _
    $region15: #{image_clip_forward.25} parent=1 // pred_check_branch
      %17 = sbr.rel (0) target = $region17
    $region16: #{image_clip_forward.25} parent=1 // pred_region
      _
    $region17: #{image_clip_forward.25} parent=1 // pred_fallthru
      _
    %v19 = vld [vmem:[%s0] sm:$0x1]
    %v20 = vunpack.c.l.bf16 %v19
    %vm21 = vcmask 254976
    %v22 = vsel %vm21, %v20, 0.0
    %23 = vadd.xlane.f32.xlu0 %v22
    %v24 = vpop.xlane.xlu0 %23
    %v25 = vrcp.pop 32.0
    %v26 = vmul.f32 %v24, %v25
    %v27 = vsub.f32 %v20, %v26
    %v28 = vmul.f32 %v27, %v27
    %v29 = vsel %vm21, %v28, 0.0
    %30 = vadd.xlane.f32.xlu0 %v29
    %v31 = vpop.xlane.xlu0 %30
    %v32 = vmul.f32 %v31, %v25
    %v33 = vadd.f32 %v32, 1e-05
    %v34 = vrsqrt.pop %v33
    %v35 = vmul.f32 %v27, %v34
    %v36 = vld [vmem:[%s2] sm:$0x1]
    %v38 = vlaneseq
    %v39 = vshrl.u32 %v38, 7
    %v40 = vsub.s32 0, %v39
    %v41 = vrot.slane %v36, %v40
    %v43 = vmul.f32 %v35, %v41
    %v44 = vld [vmem:[%s3] sm:$0x1]
    %v46 = vlaneseq
    %v47 = vshrl.u32 %v46, 7
    %v48 = vsub.s32 0, %v47
    %v49 = vrot.slane %v44, %v48
    %v51 = vadd.f32 %v43, %v49
    %v52 = vpack.c.bf16 %v51, %v51
    %v53 = vld [vmem:[%s1] sm:$0xf]
    %v54 = vld [vmem:[%s1 + $0x4] sm:$0xf]
    %v55 = vld [vmem:[%s1 + $0x8] sm:$0xf]
    %v56 = vld [vmem:[%s1 + $0xc] sm:$0xf]
    %v61 = vunpack.c.l.b16 %v53
    %v62 = vunpack.c.l.b16 %v54
    %v63 = vunpack.c.l.b16 %v55
    %v64 = vunpack.c.l.b16 %v56
    %v65 = vpack.c.b16 %v62, %v61
    %v66 = vpack.c.b16 %v64, %v63
    %vm69 = vcmask 261120
    %v71 = vsel %vm69, %v52, 0
    %73 = vmatprep.subr.bf16.mxu0 0
    %74 = vmatpush1.bf16.msra.mxu0 0
    %75 = vmatprep.subr.bf16.mxu0 0
    %76 = vmatpush1.bf16.msra.mxu0 0
    %77 = vmatprep.subr.bf16.mxu0 0
    %78 = vmatpush1.bf16.msra.mxu0 0
    %79 = vmatprep.subr.bf16.mxu0 0
    %80 = vmatpush1.bf16.msra.mxu0 0
    %81 = vmatprep.subr.bf16.mxu0 0
    %82 = vmatpush1.bf16.msra.mxu0 0
    %83 = vmatprep.subr.bf16.mxu0 0
    %84 = vmatpush1.bf16.msra.mxu0 0
    %85 = vmatprep.subr.bf16.mxu0 0
    %86 = vmatpush1.bf16.msra.mxu0 %v66
    %87 = vmatprep.subr.bf16.mxu0 0
    %88 = vmatpush1.bf16.msra.mxu0 %v65
    %89 = vmatprep.subr.bf16.mxu0 0
    %90 = vmatpush2.bf16.msra.mxu0 0
    %91 = vmatprep.subr.bf16.mxu0 0
    %92 = vmatpush2.bf16.msra.mxu0 0
    %93 = vmatprep.subr.bf16.mxu0 0
    %94 = vmatpush2.bf16.msra.mxu0 0
    %95 = vmatprep.subr.bf16.mxu0 0
    %96 = vmatpush2.bf16.msra.mxu0 0
    %97 = vmatprep.subr.bf16.mxu0 0
    %98 = vmatpush2.bf16.msra.mxu0 0
    %99 = vmatprep.subr.bf16.mxu0 0
    %100 = vmatpush2.bf16.msra.mxu0 0
    %101 = vmatprep.subr.bf16.mxu0 0
    %102 = vmatpush2.bf16.msra.mxu0 0
    %103 = vmatprep.subr.bf16.mxu0 0
    %104 = vmatpush2.bf16.msra.mxu0 0
    %105 = vmatprep.mubr.bf16.mxu0 0
    %106 = vmatmul.mubr.bf16.gmra.mxu0 %v71
    %v107 = vpop.f32.mrf.mxu0
    %v108 = vadd.f32 0.0, %v107
    %v109 = vpop.f32.mrf.mxu0
    %v110 = vpop.f32.mrf.mxu0
    %v111 = vpop.f32.mrf.mxu0
    %112 = vdwg.mxu0
    %vm113 = vcmask 123904
    %114 = vst.msk [vmem:[#allocation2] sm:$0x3] %vm113, %v108
    // Predicated region
    $region18: #{image_clip_forward.25} parent=1 // pred_check
      _
    $region19: #{image_clip_forward.25} parent=1 // pred_check_branch
      %116 = sbr.rel (0) target = $region21
    $region20: #{image_clip_forward.25} parent=1 // pred_region
      %s118 = ssub.s32 32, 32
      %119 = vsyncadd [#allocation3], %s118
      %s121 = sshll.u32 [#allocation2], 4
      %s122 = int_to_ptr.vmem [resolvable:$true] %s121
      %124 = dma.vmem_to_hbm [thread:$0]  %s122, 32, %s4, [#allocation3]
    $region21: #{image_clip_forward.25} parent=1 // pred_fallthru
      _
    // Predicated region
    $region22: #{image_clip_forward.25} parent=1 // pred_check
      _
    $region23: #{image_clip_forward.25} parent=1 // pred_check_branch
      %126 = sbr.rel (0) target = $region25
    $region24: #{image_clip_forward.25} parent=1 // pred_region
      %127 = dma.done [#allocation3], 32
    $region25: #{image_clip_forward.25} parent=1 // pred_fallthru
      _
    %128 = vsyncpa [#allocation3], 1

</llo_original>
